<compile_context>
chip_gen: v7x
topology: tpu7x:2x2x1
jax: 0.10.0
libtpu: 0.0.40
codegen_flags: <defaults>
</compile_context>

<pallas_src>
import functools

import jax
import jax.numpy as jnp
from jax.experimental import pallas as pl
from jax.experimental.pallas import tpu as pltpu


# ----------------------------- small helpers -------------------------------

def _round_up(x, m):
    return ((x + m - 1) // m) * m


_MM_CPARAMS = pltpu.CompilerParams(dimension_semantics=("parallel",),
                                   vmem_limit_bytes=32 * 1024 * 1024)
_CONV_CPARAMS = pltpu.CompilerParams(vmem_limit_bytes=32 * 1024 * 1024)


# ---------------- fused Linear / 1x1 conv (+bias +BN +ReLU) -----------------

def _mm_fused_kernel(x_ref, w_ref, b_ref, o_ref, acc_ref, *, bn, relu, inv_m):
    # x: (Mp, K) bf16 ; w: (K, tn) bf16 ; b: (1, tn) f32
    # o: (Mp, tn) bf16/f32 ; acc: VMEM (Mp, tn) f32
    acc_ref[...] = (jnp.dot(x_ref[...], w_ref[...],
                            preferred_element_type=jnp.float32) + b_ref[...])
    y = acc_ref[...]
    if bn:
        # train-mode BatchNorm over the M rows (per output channel), no affine
        mean = jnp.sum(y, axis=0, keepdims=True) * inv_m
        ex2 = jnp.sum(y * y, axis=0, keepdims=True) * inv_m
        var = jnp.maximum(ex2 - mean * mean, 0.0)
        y = (y - mean) * jax.lax.rsqrt(var + 1e-5)
    if relu:
        y = jnp.maximum(y, 0.0)
    o_ref[...] = y.astype(o_ref.dtype)


def fused_linear(x2d, wp, bp, n_out, *, bn=False, relu=False,
                 out_dtype=jnp.bfloat16):
    """x2d:(M,K) @ wp:(K,Np) + bp, optionally BN(+ReLU) fused, -> (M, n_out).

    wp/bp are pre-transposed / N-padded / bf16-cast at init.  K is used at full
    extent (no activation channel padding); only the weight carries the 128
    lane padding.  bf16 output, f32 VMEM accumulator.
    """
    M, K = x2d.shape
    Np = wp.shape[1]
    Mp = _round_up(M, 8)
    if bn:
        assert Mp == M, "fused BN assumes M % 8 == 0 (no padded rows)"
    xb = x2d.astype(jnp.bfloat16)
    if Mp != M:
        xb = jnp.pad(xb, ((0, Mp - M), (0, 0)))
    tn = 128
    out = pl.pallas_call(
        functools.partial(_mm_fused_kernel, bn=bn, relu=relu, inv_m=1.0 / M),
        out_shape=jax.ShapeDtypeStruct((Mp, Np), out_dtype),
        grid=(Np // tn,),
        in_specs=[pl.BlockSpec((Mp, K), lambda j: (0, 0)),
                  pl.BlockSpec((K, tn), lambda j: (0, j)),
                  pl.BlockSpec((1, tn), lambda j: (0, j))],
        out_specs=pl.BlockSpec((Mp, tn), lambda j: (0, j)),
        scratch_shapes=[pltpu.VMEM((Mp, tn), jnp.float32)],
        compiler_params=_MM_CPARAMS,
    )(xb, wp, bp)
    return out[:M, :n_out]


# --------------------- fused 3x3 conv + BN + ReLU kernel ---------------------

def _conv3x3_bn_kernel(x2_ref, w_ref, mask_ref, o_ref, acc_ref, *,
                       taps, rout, nb, inv_m, relu):
    # x2_ref : (nb, r2, Cin) bf16   row-flattened spatially padded images
    # w_ref  : (9, Cin, Cop) bf16   one (Cin, Cop) matrix per tap
    # mask_ref: (rout, 1) f32       1.0 on valid output rows (masks pad junk)
    # o_ref  : (nb, rout, Cop) bf16
    # acc_ref: VMEM (nb, rout, Cop) f32 scratch accumulator
    for b in range(nb):                       # static unroll (tiny batch)
        x2 = x2_ref[b]
        acc_ref[b] = jnp.dot(x2[taps[0]:taps[0] + rout, :], w_ref[0],
                             preferred_element_type=jnp.float32)
        for t in range(1, 9):                 # static 9-tap unroll
            s = taps[t]
            acc_ref[b] = acc_ref[b] + jnp.dot(
                x2[s:s + rout, :], w_ref[t],
                preferred_element_type=jnp.float32)

    # train-mode BatchNorm stats over all batches / valid rows (per channel)
    mask = mask_ref[...]
    cop = acc_ref.shape[2]
    msum = jnp.zeros((1, cop), jnp.float32)
    msq = jnp.zeros((1, cop), jnp.float32)
    for b in range(nb):
        a = acc_ref[b] * mask
        msum = msum + jnp.sum(a, axis=0, keepdims=True)
        msq = msq + jnp.sum(a * a, axis=0, keepdims=True)
    mean = msum * inv_m
    var = jnp.maximum(msq * inv_m - mean * mean, 0.0)
    scale = jax.lax.rsqrt(var + 1e-5)
    for b in range(nb):
        y = (acc_ref[b] - mean) * scale
        if relu:
            y = jnp.maximum(y, 0.0)
        o_ref[b] = y.astype(o_ref.dtype)


def conv3x3_bn_relu(x, wk, cout, *, relu=True):
    """3x3 conv (stride 1, pad 1, no bias) + train-mode BN (+ReLU), NHWC.

    The padded image is row-flattened so each tap is a row shift of the same
    VMEM-resident array: 9 accumulated matmuls, no HBM im2col, accumulator in
    VMEM scratch, BN/ReLU/bf16-cast fused in the epilogue.  One kernel call
    covers the whole batch (needed for whole-batch BN stats).
    """
    x = x.astype(jnp.bfloat16)
    B, H, W, C = x.shape
    Cop = wk.shape[2]
    Hp2, Wp2 = H + 2, W + 2
    rout = _round_up(H * Wp2, 8)
    r2 = _round_up(max(Hp2 * Wp2, rout + 2 * Wp2 + 2), 8)
    taps = tuple(kh * Wp2 + kw for kh in range(3) for kw in range(3))

    xp = jnp.pad(x, ((0, 0), (1, 1), (1, 1), (0, 0)))
    x2 = jnp.pad(xp.reshape(B, Hp2 * Wp2, C),
                 ((0, 0), (0, r2 - Hp2 * Wp2), (0, 0)))
    ridx = jnp.arange(rout, dtype=jnp.int32).reshape(rout, 1)
    mask = ((ridx < H * Wp2) & ((ridx % Wp2) < W)).astype(jnp.float32)

    out2 = pl.pallas_call(
        functools.partial(_conv3x3_bn_kernel, taps=taps, rout=rout, nb=B,
                          inv_m=1.0 / (B * H * W), relu=relu),
        out_shape=jax.ShapeDtypeStruct((B, rout, Cop), jnp.bfloat16),
        grid=(1,),
        in_specs=[pl.BlockSpec((B, r2, C), lambda i: (0, 0, 0)),
                  pl.BlockSpec((9, C, Cop), lambda i: (0, 0, 0)),
                  pl.BlockSpec((rout, 1), lambda i: (0, 0))],
        out_specs=pl.BlockSpec((B, rout, Cop), lambda i: (0, 0, 0)),
        scratch_shapes=[pltpu.VMEM((B, rout, Cop), jnp.float32)],
        compiler_params=_CONV_CPARAMS,
    )(x2, wk, mask)
    return out2[:, :H * Wp2, :].reshape(B, H, Wp2, Cop)[:, :, :W, :cout]


# ---------------------- LayerNorm (per-row) kernel ---------------------------

def _rownorm_kernel(x_ref, o_ref):
    x = x_ref[...].astype(jnp.float32)
    mean = jnp.mean(x, axis=-1, keepdims=True)
    xc = x - mean
    var = jnp.mean(xc * xc, axis=-1, keepdims=True)
    o_ref[...] = (xc * jax.lax.rsqrt(var + 1e-5)).astype(o_ref.dtype)


def rownorm(x2d, out_dtype=jnp.bfloat16):
    """LayerNorm (no affine, eps=1e-5) of each row; reduction dim stays whole."""
    R, D = x2d.shape
    Rp = _round_up(R, 8)
    xp = x2d if Rp == R else jnp.pad(x2d, ((0, Rp - R), (0, 0)))
    out = pl.pallas_call(
        _rownorm_kernel,
        out_shape=jax.ShapeDtypeStruct((Rp, D), out_dtype),
        grid=(1,),
        in_specs=[pl.BlockSpec((Rp, D), lambda i: (0, 0))],
        out_specs=pl.BlockSpec((Rp, D), lambda i: (0, 0)),
    )(xp)
    return out[:R]


def layer_norm_full(x):
    # F.layer_norm(x, x.size()[1:]) with no affine (per-sample over C,H,W)
    B = x.shape[0]
    return rownorm(x.reshape(B, -1)).reshape(x.shape)


# ------------- fused head: SPA linear + GAP + add + LayerNorm ---------------

def _head_kernel(x_ref, w_ref, b_ref, o_ref, *, inv_hw, nb):
    # x: (B, HW, C) bf16 ; w: (HW, 1) f32 ; b: (1, 1) f32 ; o: (B, 1, C) f32
    w = w_ref[...]
    bias = b_ref[...]
    for b in range(nb):
        xb = x_ref[b].astype(jnp.float32)                     # (HW, C)
        gap = jnp.sum(xb, axis=0, keepdims=True) * inv_hw     # (1, C)
        spa = jnp.sum(xb * w, axis=0, keepdims=True) + bias   # (1, C)
        y = gap + spa
        mean = jnp.mean(y, axis=-1, keepdims=True)
        yc = y - mean
        var = jnp.mean(yc * yc, axis=-1, keepdims=True)
        o_ref[b] = yc * jax.lax.rsqrt(var + 1e-5)


def head_scale(x, p):
    """Per-scale head: layer_norm(global_avg_pool(x) + SPA(x)) -> (B, C) f32."""
    B, H, W, C = x.shape
    HW = H * W
    x3 = x.astype(jnp.bfloat16).reshape(B, HW, C)
    out = pl.pallas_call(
        functools.partial(_head_kernel, inv_hw=1.0 / HW, nb=B),
        out_shape=jax.ShapeDtypeStruct((B, 1, C), jnp.float32),
        grid=(1,),
        in_specs=[pl.BlockSpec((B, HW, C), lambda i: (0, 0, 0)),
                  pl.BlockSpec((HW, 1), lambda i: (0, 0)),
                  pl.BlockSpec((1, 1), lambda i: (0, 0))],
        out_specs=pl.BlockSpec((B, 1, C), lambda i: (0, 0, 0)),
    )(x3, p["w"], p["b"])
    return out.reshape(B, C)


# ------------------------------ jnp glue ------------------------------------

def avgpool2(x):
    B, H, W, C = x.shape
    return x.reshape(B, H // 2, 2, W // 2, 2, C).mean(axis=(2, 4))


# ------------------------- static architecture config -----------------------

def make_layer_cfg(in_planes, planes, num_blocks, stride):
    # Mirrors upanets._make_layer, including the in-loop `strides.append(1)`.
    strides = [stride] + [1] * (num_blocks - 1)
    blocks = []
    planes_r = planes // num_blocks
    idx = 0
    while idx < len(strides):
        s = strides[idx]
        if idx == 0 and s == 1:
            blocks.append((planes, planes, s, True, False))       # same
            strides.append(1)
            in_planes = planes
        elif idx != 0 and s == 1:
            blocks.append((in_planes, planes_r, s, False, True))  # cat
            in_planes = in_planes + planes_r
        else:
            blocks.append((in_planes, planes, s, False, False))   # stride 2
            strides.append(1)
            in_planes = planes
        idx += 1
    return tuple(blocks), in_planes


def build_cfg(num_blocks, filters, num_classes, img):
    layers = []
    in_planes = filters
    for mult, nb in zip((1, 2, 4, 8), num_blocks):
        stride = 1 if mult == 1 else 2
        blocks, in_planes = make_layer_cfg(in_planes, filters * mult, nb, stride)
        layers.append(blocks)
    return {"filters": filters, "num_classes": num_classes, "img": img,
            "layers": tuple(layers)}


# --------------------------- parameter init / prep ---------------------------

class KeyGen:
    def __init__(self, seed):
        self.key = jax.random.PRNGKey(seed)

    def __call__(self):
        self.key, sub = jax.random.split(self.key)
        return sub


def _prep_linear(key, in_dim, out_dim):
    # nn.Linear init, then prep: transpose to (K, Np), N-pad to 128, bf16.
    kw, kb = jax.random.split(key)
    bound = 1.0 / (in_dim ** 0.5)
    w = jax.random.uniform(kw, (out_dim, in_dim), jnp.float32, -bound, bound)
    b = jax.random.uniform(kb, (out_dim,), jnp.float32, -bound, bound)
    np_ = _round_up(out_dim, 128)
    wp = jnp.pad(w.T, ((0, 0), (0, np_ - out_dim))).astype(jnp.bfloat16)
    bp = jnp.pad(b, (0, np_ - out_dim)).astype(jnp.float32).reshape(1, np_)
    return {"w": wp, "b": bp}


def _prep_conv3x3(key, cin, cout):
    fan_in = cin * 9
    bound = 1.0 / (fan_in ** 0.5)
    w = jax.random.uniform(key, (cout, cin, 3, 3), jnp.float32, -bound, bound)
    cop = _round_up(cout, 128)
    wk = jnp.transpose(w, (2, 3, 1, 0)).reshape(9, cin, cout)
    return jnp.pad(wk, ((0, 0), (0, 0), (0, cop - cout))).astype(jnp.bfloat16)


def _prep_conv1x1(key, cin, cout):
    bound = 1.0 / (cin ** 0.5)
    w = jax.random.uniform(key, (cout, cin, 1, 1), jnp.float32, -bound, bound)
    cop = _round_up(cout, 128)
    wp = jnp.pad(w.reshape(cout, cin).T,
                 ((0, 0), (0, cop - cout))).astype(jnp.bfloat16)
    return {"w": wp, "b": jnp.zeros((1, cop), jnp.float32)}   # bias=False


def _prep_spa(key, s):
    kw, kb = jax.random.split(key)
    n = s * s
    bound = 1.0 / (n ** 0.5)
    w = jax.random.uniform(kw, (1, n), jnp.float32, -bound, bound)
    b = jax.random.uniform(kb, (1,), jnp.float32, -bound, bound)
    return {"w": w.reshape(n, 1), "b": b.reshape(1, 1)}


def _prep_cpa(kg, in_dim, dim, stride, same):
    p = {"cp_ffc": _prep_linear(kg(), in_dim, dim)}
    if stride == 2 or same:
        p["cp_ffc_sc"] = _prep_linear(kg(), in_dim, dim)
    return p


def _prep_block(kg, in_planes, planes, stride, same, cat):
    w = 1 if same else 2
    return {"conv1": _prep_conv3x3(kg(), in_planes, planes * w),
            "conv2": _prep_conv1x1(kg(), planes * w, planes),
            "att": _prep_cpa(kg, in_planes, planes, stride, same)}


def init_params(seed, cfg):
    kg = KeyGen(seed)
    filters, img = cfg["filters"], cfg["img"]
    p = {"root_conv1": _prep_conv3x3(kg(), 3, filters * 2),
         "root_conv2": _prep_conv3x3(kg(), filters * 2, filters),
         "emb": _prep_cpa(kg, 3, filters, 1, True)}
    layers = []
    for blocks in cfg["layers"]:
        layers.append([_prep_block(kg, ip, pf, st, sm, ct)
                       for (ip, pf, st, sm, ct) in blocks])
    p["layers"] = layers
    p["spa"] = [_prep_spa(kg(), s)
                for s in (img, img, img // 2, img // 4, img // 8)]
    p["linear"] = _prep_linear(kg(), filters * 31, cfg["num_classes"])
    return p


# ------------------------------ forward pass --------------------------------

def cpa_forward(p, x, sc_x, dim, stride, same):
    B, H, W, C = x.shape
    out = fused_linear(x.reshape(B * H * W, C), p["cp_ffc"]["w"],
                       p["cp_ffc"]["b"], dim, bn=True)
    out = out.reshape(B, H, W, dim)
    if out.shape == sc_x.shape:
        out = sc_x + out
        out = layer_norm_full(out)
    else:
        out = layer_norm_full(out)
        x = sc_x
    if stride == 2 or same:
        Bx, Hx, Wx, Cx = x.shape
        xs = fused_linear(x.reshape(Bx * Hx * Wx, Cx), p["cp_ffc_sc"]["w"],
                          p["cp_ffc_sc"]["b"], dim, bn=True)
        out = out + xs.reshape(Bx, Hx, Wx, dim)
        if same:
            return out
        out = avgpool2(out)
    return out


def block_forward(bcfg, p, x):
    _, planes, stride, same, cat = bcfg
    w = 1 if same else 2
    out = conv3x3_bn_relu(x, p["conv1"], planes * w)            # conv1+BN+ReLU
    B, H, W, _ = out.shape
    out = fused_linear(out.reshape(B * H * W, planes * w), p["conv2"]["w"],
                       p["conv2"]["b"], planes, bn=True, relu=True)
    out = out.reshape(B, H, W, planes)                          # conv2+BN+ReLU
    out = cpa_forward(p["att"], x, out, planes, stride, same)
    if cat:
        out = jnp.concatenate([x, out], axis=-1)
    return out


def upanets_forward(cfg, params, x_nchw):
    filters = cfg["filters"]
    x = jnp.transpose(x_nchw, (0, 2, 3, 1)).astype(jnp.bfloat16)  # NCHW -> NHWC

    out01 = conv3x3_bn_relu(x, params["root_conv1"], filters * 2)
    out01 = conv3x3_bn_relu(out01, params["root_conv2"], filters)
    out0 = cpa_forward(params["emb"], x, out01, filters, 1, True)

    outs = [out0]
    cur = out0
    for lcfg, lp in zip(cfg["layers"], params["layers"]):
        for bcfg, bp in zip(lcfg, lp):
            cur = block_forward(bcfg, bp, cur)
        outs.append(cur)

    fused = [head_scale(o, sp) for o, sp in zip(outs, params["spa"])]
    out = jnp.concatenate([fused[4], fused[3], fused[2], fused[1], fused[0]],
                          axis=-1)
    # nn.BatchNorm1d (train mode) on a tiny (batch, 248) tensor -> plain jnp.
    mean = jnp.mean(out, axis=0, keepdims=True)
    var = jnp.mean(jnp.square(out - mean), axis=0, keepdims=True)
    out = (out - mean) * jax.lax.rsqrt(var + 1e-5)
    return fused_linear(out, params["linear"]["w"], params["linear"]["b"],
                        cfg["num_classes"], out_dtype=jnp.float32)


# ---------------------------------- main ------------------------------------

if __name__ == "__main__":
    FILTERS = 8
    NUM_BLOCKS = [2, 2, 2, 2]
    NUM_CLASSES = 10
    IMG = 16
    BATCH = 2

    # --- self-check: fused 3x3 conv + BN + ReLU vs XLA reference ---
    kc0, kc1 = jax.random.split(jax.random.PRNGKey(1))
    Bc, Hc, Wc, Cin, Cout = 2, 6, 5, 7, 13
    xc = jax.random.normal(kc0, (Bc, Hc, Wc, Cin), jnp.float32)
    wc = jax.random.normal(kc1, (Cout, Cin, 3, 3), jnp.float32) * 0.1
    wk = jnp.pad(jnp.transpose(wc, (2, 3, 1, 0)).reshape(9, Cin, Cout),
                 ((0, 0), (0, 0), (0, 128 - Cout))).astype(jnp.bfloat16)
    got = conv3x3_bn_relu(xc, wk, Cout).astype(jnp.float32)
    ref = jax.lax.conv_general_dilated(
        xc.astype(jnp.bfloat16).astype(jnp.float32),
        jnp.transpose(wc, (2, 3, 1, 0)).astype(jnp.bfloat16).astype(jnp.float32),
        (1, 1), "SAME", dimension_numbers=("NHWC", "HWIO", "NHWC"))
    rm = jnp.mean(ref, axis=(0, 1, 2), keepdims=True)
    rv = jnp.mean(jnp.square(ref - rm), axis=(0, 1, 2), keepdims=True)
    ref_bn = jnp.maximum((ref - rm) * jax.lax.rsqrt(rv + 1e-5), 0.0)
    err = float(jnp.max(jnp.abs(got - ref_bn)))
    assert err < 7.5e-2, err

    # --- self-check: fused linear + bias + BN + ReLU ---
    km0, km1, km2 = jax.random.split(jax.random.PRNGKey(2), 3)
    xm = jax.random.normal(km0, (16, 10), jnp.float32)
    wm = jax.random.normal(km1, (5, 10), jnp.float32) * 0.3
    bm = jax.random.normal(km2, (5,), jnp.float32)
    wp = jnp.pad(wm.T, ((0, 0), (0, 128 - 5))).astype(jnp.bfloat16)
    bp = jnp.pad(bm, (0, 128 - 5)).reshape(1, 128).astype(jnp.float32)
    gotm = fused_linear(xm, wp, bp, 5, bn=True, relu=True).astype(jnp.float32)
    refm = (xm.astype(jnp.bfloat16).astype(jnp.float32)
            @ wm.T.astype(jnp.bfloat16).astype(jnp.float32) + bm)
    mm = refm.mean(axis=0, keepdims=True)
    vv = jnp.mean(jnp.square(refm - mm), axis=0, keepdims=True)
    refm = jnp.maximum((refm - mm) * jax.lax.rsqrt(vv + 1e-5), 0.0)
    errm = float(jnp.max(jnp.abs(gotm - refm)))
    assert errm < 7.5e-2, errm

    # --- full forward ---
    cfg = build_cfg(NUM_BLOCKS, FILTERS, NUM_CLASSES, IMG)
    params = init_params(0, cfg)
    fwd = jax.jit(functools.partial(upanets_forward, cfg))
    x = jax.random.normal(jax.random.PRNGKey(0), (BATCH, 3, IMG, IMG),
                          jnp.float32)
    out = jax.block_until_ready(fwd(params, x))

    assert out.shape == (BATCH, NUM_CLASSES), out.shape
    assert bool(jnp.all(jnp.isfinite(out)))
    print("KERNEL_OK")
</pallas_src>

<mosaic_0001>
module attributes {stable_mosaic.version = 11 : i64} {
  func.func @_conv3x3_bn_kernel(%arg0: i32, %arg1: memref<2x64x7xbf16, #tpu.memory_space<vmem>>, %arg2: memref<9x7x128xbf16, #tpu.memory_space<vmem>>, %arg3: memref<48x1xf32, #tpu.memory_space<vmem>>, %arg4: memref<2x48x128xbf16, #tpu.memory_space<vmem>>, %arg5: memref<2x48x128xf32, #tpu.memory_space<vmem>>) attributes {dimension_semantics = [#tpu.dimension_semantics<arbitrary>], iteration_bounds = array<i64: 1>, scalar_prefetch = 0 : i64, scratch_operands = 1 : i64, tpu.core_type = #tpu.core_type<tc>, window_params = [{pipeline_mode = #tpu.pipeline_mode<synchronous>, transform_indices = @transform_0, window_bounds = array<i64: 2, 64, 7>}, {pipeline_mode = #tpu.pipeline_mode<synchronous>, transform_indices = @transform_1, window_bounds = array<i64: 9, 7, 128>}, {pipeline_mode = #tpu.pipeline_mode<synchronous>, transform_indices = @transform_2, window_bounds = array<i64: 48, 1>}, {pipeline_mode = #tpu.pipeline_mode<synchronous>, transform_indices = @transform_3, window_bounds = array<i64: 2, 48, 128>}]} {
    %c0 = arith.constant 0 : index
    %c0_0 = arith.constant 0 : index
    %c0_1 = arith.constant 0 : index
    %0 = vector.load %arg1[%c0, %c0_0, %c0_1] : memref<2x64x7xbf16, #tpu.memory_space<vmem>>, vector<1x64x7xbf16>
    %1 = vector.shape_cast %0 : vector<1x64x7xbf16> to vector<64x7xbf16>
    %2 = vector.extract_strided_slice %1 {offsets = [0, 0], sizes = [48, 7], strides = [1, 1]} : vector<64x7xbf16> to vector<48x7xbf16>
    %c0_2 = arith.constant 0 : index
    %c0_3 = arith.constant 0 : index
    %c0_4 = arith.constant 0 : index
    %3 = vector.load %arg2[%c0_2, %c0_3, %c0_4] : memref<9x7x128xbf16, #tpu.memory_space<vmem>>, vector<1x7x128xbf16>
    %4 = vector.shape_cast %3 : vector<1x7x128xbf16> to vector<7x128xbf16>
    %cst = arith.constant dense<0.000000e+00> : vector<48x128xf32>
    %5 = tpu.matmul %2, %4, %cst {dimension_numbers = #tpu.dot_dimension_numbers<[1], [0], [0], [1], [0, 0, 1, 1], [], []>} : vector<48x7xbf16>, vector<7x128xbf16>, vector<48x128xf32> -> vector<48x128xf32>
    %c0_5 = arith.constant 0 : index
    %c0_6 = arith.constant 0 : index
    %c0_7 = arith.constant 0 : index
    %6 = vector.load %arg5[%c0_5, %c0_6, %c0_7] : memref<2x48x128xf32, #tpu.memory_space<vmem>>, vector<1x48x128xf32>
    %7 = vector.shape_cast %6 : vector<1x48x128xf32> to vector<48x128xf32>
    %8 = vector.shape_cast %5 : vector<48x128xf32> to vector<1x48x128xf32>
    tpu.vector_store %arg5[%c0_5, %c0_6, %c0_7], %8 {strides = array<i32>} : memref<2x48x128xf32, #tpu.memory_space<vmem>>, vector<1x48x128xf32>,
    %c0_8 = arith.constant 0 : index
    %c0_9 = arith.constant 0 : index
    %c0_10 = arith.constant 0 : index
    %9 = vector.load %arg5[%c0_8, %c0_9, %c0_10] : memref<2x48x128xf32, #tpu.memory_space<vmem>>, vector<1x48x128xf32>
    %10 = vector.shape_cast %9 : vector<1x48x128xf32> to vector<48x128xf32>
    %11 = vector.extract_strided_slice %1 {offsets = [1, 0], sizes = [48, 7], strides = [1, 1]} : vector<64x7xbf16> to vector<48x7xbf16>
    %c1 = arith.constant 1 : index
    %c0_11 = arith.constant 0 : index
    %c0_12 = arith.constant 0 : index
    %12 = vector.load %arg2[%c1, %c0_11, %c0_12] : memref<9x7x128xbf16, #tpu.memory_space<vmem>>, vector<1x7x128xbf16>
    %13 = vector.shape_cast %12 : vector<1x7x128xbf16> to vector<7x128xbf16>
    %cst_13 = arith.constant dense<0.000000e+00> : vector<48x128xf32>
    %14 = tpu.matmul %11, %13, %cst_13 {dimension_numbers = #tpu.dot_dimension_numbers<[1], [0], [0], [1], [0, 0, 1, 1], [], []>} : vector<48x7xbf16>, vector<7x128xbf16>, vector<48x128xf32> -> vector<48x128xf32>
    %15 = arith.addf %10, %14 : vector<48x128xf32>
    %c0_14 = arith.constant 0 : index
    %c0_15 = arith.constant 0 : index
    %c0_16 = arith.constant 0 : index
    %16 = vector.load %arg5[%c0_14, %c0_15, %c0_16] : memref<2x48x128xf32, #tpu.memory_space<vmem>>, vector<1x48x128xf32>
    %17 = vector.shape_cast %16 : vector<1x48x128xf32> to vector<48x128xf32>
    %18 = vector.shape_cast %15 : vector<48x128xf32> to vector<1x48x128xf32>
    tpu.vector_store %arg5[%c0_14, %c0_15, %c0_16], %18 {strides = array<i32>} : memref<2x48x128xf32, #tpu.memory_space<vmem>>, vector<1x48x128xf32>,
    %c0_17 = arith.constant 0 : index
    %c0_18 = arith.constant 0 : index
    %c0_19 = arith.constant 0 : index
    %19 = vector.load %arg5[%c0_17, %c0_18, %c0_19] : memref<2x48x128xf32, #tpu.memory_space<vmem>>, vector<1x48x128xf32>
    %20 = vector.shape_cast %19 : vector<1x48x128xf32> to vector<48x128xf32>
    %21 = vector.extract_strided_slice %1 {offsets = [2, 0], sizes = [48, 7], strides = [1, 1]} : vector<64x7xbf16> to vector<48x7xbf16>
    %c2 = arith.constant 2 : index
    %c0_20 = arith.constant 0 : index
    %c0_21 = arith.constant 0 : index
    %22 = vector.load %arg2[%c2, %c0_20, %c0_21] : memref<9x7x128xbf16, #tpu.memory_space<vmem>>, vector<1x7x128xbf16>
    %23 = vector.shape_cast %22 : vector<1x7x128xbf16> to vector<7x128xbf16>
    %cst_22 = arith.constant dense<0.000000e+00> : vector<48x128xf32>
    %24 = tpu.matmul %21, %23, %cst_22 {dimension_numbers = #tpu.dot_dimension_numbers<[1], [0], [0], [1], [0, 0, 1, 1], [], []>} : vector<48x7xbf16>, vector<7x128xbf16>, vector<48x128xf32> -> vector<48x128xf32>
    %25 = arith.addf %20, %24 : vector<48x128xf32>
    %c0_23 = arith.constant 0 : index
    %c0_24 = arith.constant 0 : index
    %c0_25 = arith.constant 0 : index
    %26 = vector.load %arg5[%c0_23, %c0_24, %c0_25] : memref<2x48x128xf32, #tpu.memory_space<vmem>>, vector<1x48x128xf32>
    %27 = vector.shape_cast %26 : vector<1x48x128xf32> to vector<48x128xf32>
    %28 = vector.shape_cast %25 : vector<48x128xf32> to vector<1x48x128xf32>
    tpu.vector_store %arg5[%c0_23, %c0_24, %c0_25], %28 {strides = array<i32>} : memref<2x48x128xf32, #tpu.memory_space<vmem>>, vector<1x48x128xf32>,
    %c0_26 = arith.constant 0 : index
    %c0_27 = arith.constant 0 : index
    %c0_28 = arith.constant 0 : index
    %29 = vector.load %arg5[%c0_26, %c0_27, %c0_28] : memref<2x48x128xf32, #tpu.memory_space<vmem>>, vector<1x48x128xf32>
    %30 = vector.shape_cast %29 : vector<1x48x128xf32> to vector<48x128xf32>
    %31 = vector.extract_strided_slice %1 {offsets = [7, 0], sizes = [48, 7], strides = [1, 1]} : vector<64x7xbf16> to vector<48x7xbf16>
    %c3 = arith.constant 3 : index
    %c0_29 = arith.constant 0 : index
    %c0_30 = arith.constant 0 : index
    %32 = vector.load %arg2[%c3, %c0_29, %c0_30] : memref<9x7x128xbf16, #tpu.memory_space<vmem>>, vector<1x7x128xbf16>
    %33 = vector.shape_cast %32 : vector<1x7x128xbf16> to vector<7x128xbf16>
    %cst_31 = arith.constant dense<0.000000e+00> : vector<48x128xf32>
    %34 = tpu.matmul %31, %33, %cst_31 {dimension_numbers = #tpu.dot_dimension_numbers<[1], [0], [0], [1], [0, 0, 1, 1], [], []>} : vector<48x7xbf16>, vector<7x128xbf16>, vector<48x128xf32> -> vector<48x128xf32>
    %35 = arith.addf %30, %34 : vector<48x128xf32>
    %c0_32 = arith.constant 0 : index
    %c0_33 = arith.constant 0 : index
    %c0_34 = arith.constant 0 : index
    %36 = vector.load %arg5[%c0_32, %c0_33, %c0_34] : memref<2x48x128xf32, #tpu.memory_space<vmem>>, vector<1x48x128xf32>
    %37 = vector.shape_cast %36 : vector<1x48x128xf32> to vector<48x128xf32>
    %38 = vector.shape_cast %35 : vector<48x128xf32> to vector<1x48x128xf32>
    tpu.vector_store %arg5[%c0_32, %c0_33, %c0_34], %38 {strides = array<i32>} : memref<2x48x128xf32, #tpu.memory_space<vmem>>, vector<1x48x128xf32>,
    %c0_35 = arith.constant 0 : index
    %c0_36 = arith.constant 0 : index
    %c0_37 = arith.constant 0 : index
    %39 = vector.load %arg5[%c0_35, %c0_36, %c0_37] : memref<2x48x128xf32, #tpu.memory_space<vmem>>, vector<1x48x128xf32>
    %40 = vector.shape_cast %39 : vector<1x48x128xf32> to vector<48x128xf32>
    %41 = vector.extract_strided_slice %1 {offsets = [8, 0], sizes = [48, 7], strides = [1, 1]} : vector<64x7xbf16> to vector<48x7xbf16>
    %c4 = arith.constant 4 : index
    %c0_38 = arith.constant 0 : index
    %c0_39 = arith.constant 0 : index
    %42 = vector.load %arg2[%c4, %c0_38, %c0_39] : memref<9x7x128xbf16, #tpu.memory_space<vmem>>, vector<1x7x128xbf16>
    %43 = vector.shape_cast %42 : vector<1x7x128xbf16> to vector<7x128xbf16>
    %cst_40 = arith.constant dense<0.000000e+00> : vector<48x128xf32>
    %44 = tpu.matmul %41, %43, %cst_40 {dimension_numbers = #tpu.dot_dimension_numbers<[1], [0], [0], [1], [0, 0, 1, 1], [], []>} : vector<48x7xbf16>, vector<7x128xbf16>, vector<48x128xf32> -> vector<48x128xf32>
    %45 = arith.addf %40, %44 : vector<48x128xf32>
    %c0_41 = arith.constant 0 : index
    %c0_42 = arith.constant 0 : index
    %c0_43 = arith.constant 0 : index
    %46 = vector.load %arg5[%c0_41, %c0_42, %c0_43] : memref<2x48x128xf32, #tpu.memory_space<vmem>>, vector<1x48x128xf32>
    %47 = vector.shape_cast %46 : vector<1x48x128xf32> to vector<48x128xf32>
    %48 = vector.shape_cast %45 : vector<48x128xf32> to vector<1x48x128xf32>
    tpu.vector_store %arg5[%c0_41, %c0_42, %c0_43], %48 {strides = array<i32>} : memref<2x48x128xf32, #tpu.memory_space<vmem>>, vector<1x48x128xf32>,
    %c0_44 = arith.constant 0 : index
    %c0_45 = arith.constant 0 : index
    %c0_46 = arith.constant 0 : index
    %49 = vector.load %arg5[%c0_44, %c0_45, %c0_46] : memref<2x48x128xf32, #tpu.memory_space<vmem>>, vector<1x48x128xf32>
    %50 = vector.shape_cast %49 : vector<1x48x128xf32> to vector<48x128xf32>
    %51 = vector.extract_strided_slice %1 {offsets = [9, 0], sizes = [48, 7], strides = [1, 1]} : vector<64x7xbf16> to vector<48x7xbf16>
    %c5 = arith.constant 5 : index
    %c0_47 = arith.constant 0 : index
    %c0_48 = arith.constant 0 : index
    %52 = vector.load %arg2[%c5, %c0_47, %c0_48] : memref<9x7x128xbf16, #tpu.memory_space<vmem>>, vector<1x7x128xbf16>
    %53 = vector.shape_cast %52 : vector<1x7x128xbf16> to vector<7x128xbf16>
    %cst_49 = arith.constant dense<0.000000e+00> : vector<48x128xf32>
    %54 = tpu.matmul %51, %53, %cst_49 {dimension_numbers = #tpu.dot_dimension_numbers<[1], [0], [0], [1], [0, 0, 1, 1], [], []>} : vector<48x7xbf16>, vector<7x128xbf16>, vector<48x128xf32> -> vector<48x128xf32>
    %55 = arith.addf %50, %54 : vector<48x128xf32>
    %c0_50 = arith.constant 0 : index
    %c0_51 = arith.constant 0 : index
    %c0_52 = arith.constant 0 : index
    %56 = vector.load %arg5[%c0_50, %c0_51, %c0_52] : memref<2x48x128xf32, #tpu.memory_space<vmem>>, vector<1x48x128xf32>
    %57 = vector.shape_cast %56 : vector<1x48x128xf32> to vector<48x128xf32>
    %58 = vector.shape_cast %55 : vector<48x128xf32> to vector<1x48x128xf32>
    tpu.vector_store %arg5[%c0_50, %c0_51, %c0_52], %58 {strides = array<i32>} : memref<2x48x128xf32, #tpu.memory_space<vmem>>, vector<1x48x128xf32>,
    %c0_53 = arith.constant 0 : index
    %c0_54 = arith.constant 0 : index
    %c0_55 = arith.constant 0 : index
    %59 = vector.load %arg5[%c0_53, %c0_54, %c0_55] : memref<2x48x128xf32, #tpu.memory_space<vmem>>, vector<1x48x128xf32>
    %60 = vector.shape_cast %59 : vector<1x48x128xf32> to vector<48x128xf32>
    %61 = vector.extract_strided_slice %1 {offsets = [14, 0], sizes = [48, 7], strides = [1, 1]} : vector<64x7xbf16> to vector<48x7xbf16>
    %c6 = arith.constant 6 : index
    %c0_56 = arith.constant 0 : index
    %c0_57 = arith.constant 0 : index
    %62 = vector.load %arg2[%c6, %c0_56, %c0_57] : memref<9x7x128xbf16, #tpu.memory_space<vmem>>, vector<1x7x128xbf16>
    %63 = vector.shape_cast %62 : vector<1x7x128xbf16> to vector<7x128xbf16>
    %cst_58 = arith.constant dense<0.000000e+00> : vector<48x128xf32>
    %64 = tpu.matmul %61, %63, %cst_58 {dimension_numbers = #tpu.dot_dimension_numbers<[1], [0], [0], [1], [0, 0, 1, 1], [], []>} : vector<48x7xbf16>, vector<7x128xbf16>, vector<48x128xf32> -> vector<48x128xf32>
    %65 = arith.addf %60, %64 : vector<48x128xf32>
    %c0_59 = arith.constant 0 : index
    %c0_60 = arith.constant 0 : index
    %c0_61 = arith.constant 0 : index
    %66 = vector.load %arg5[%c0_59, %c0_60, %c0_61] : memref<2x48x128xf32, #tpu.memory_space<vmem>>, vector<1x48x128xf32>
    %67 = vector.shape_cast %66 : vector<1x48x128xf32> to vector<48x128xf32>
    %68 = vector.shape_cast %65 : vector<48x128xf32> to vector<1x48x128xf32>
    tpu.vector_store %arg5[%c0_59, %c0_60, %c0_61], %68 {strides = array<i32>} : memref<2x48x128xf32, #tpu.memory_space<vmem>>, vector<1x48x128xf32>,
    %c0_62 = arith.constant 0 : index
    %c0_63 = arith.constant 0 : index
    %c0_64 = arith.constant 0 : index
    %69 = vector.load %arg5[%c0_62, %c0_63, %c0_64] : memref<2x48x128xf32, #tpu.memory_space<vmem>>, vector<1x48x128xf32>
    %70 = vector.shape_cast %69 : vector<1x48x128xf32> to vector<48x128xf32>
    %71 = vector.extract_strided_slice %1 {offsets = [15, 0], sizes = [48, 7], strides = [1, 1]} : vector<64x7xbf16> to vector<48x7xbf16>
    %c7 = arith.constant 7 : index
    %c0_65 = arith.constant 0 : index
    %c0_66 = arith.constant 0 : index
    %72 = vector.load %arg2[%c7, %c0_65, %c0_66] : memref<9x7x128xbf16, #tpu.memory_space<vmem>>, vector<1x7x128xbf16>
    %73 = vector.shape_cast %72 : vector<1x7x128xbf16> to vector<7x128xbf16>
    %cst_67 = arith.constant dense<0.000000e+00> : vector<48x128xf32>
    %74 = tpu.matmul %71, %73, %cst_67 {dimension_numbers = #tpu.dot_dimension_numbers<[1], [0], [0], [1], [0, 0, 1, 1], [], []>} : vector<48x7xbf16>, vector<7x128xbf16>, vector<48x128xf32> -> vector<48x128xf32>
    %75 = arith.addf %70, %74 : vector<48x128xf32>
    %c0_68 = arith.constant 0 : index
    %c0_69 = arith.constant 0 : index
    %c0_70 = arith.constant 0 : index
    %76 = vector.load %arg5[%c0_68, %c0_69, %c0_70] : memref<2x48x128xf32, #tpu.memory_space<vmem>>, vector<1x48x128xf32>
    %77 = vector.shape_cast %76 : vector<1x48x128xf32> to vector<48x128xf32>
    %78 = vector.shape_cast %75 : vector<48x128xf32> to vector<1x48x128xf32>
    tpu.vector_store %arg5[%c0_68, %c0_69, %c0_70], %78 {strides = array<i32>} : memref<2x48x128xf32, #tpu.memory_space<vmem>>, vector<1x48x128xf32>,
    %c0_71 = arith.constant 0 : index
    %c0_72 = arith.constant 0 : index
    %c0_73 = arith.constant 0 : index
    %79 = vector.load %arg5[%c0_71, %c0_72, %c0_73] : memref<2x48x128xf32, #tpu.memory_space<vmem>>, vector<1x48x128xf32>
    %80 = vector.shape_cast %79 : vector<1x48x128xf32> to vector<48x128xf32>
    %81 = vector.extract_strided_slice %1 {offsets = [16, 0], sizes = [48, 7], strides = [1, 1]} : vector<64x7xbf16> to vector<48x7xbf16>
    %c8 = arith.constant 8 : index
    %c0_74 = arith.constant 0 : index
    %c0_75 = arith.constant 0 : index
    %82 = vector.load %arg2[%c8, %c0_74, %c0_75] : memref<9x7x128xbf16, #tpu.memory_space<vmem>>, vector<1x7x128xbf16>
    %83 = vector.shape_cast %82 : vector<1x7x128xbf16> to vector<7x128xbf16>
    %cst_76 = arith.constant dense<0.000000e+00> : vector<48x128xf32>
    %84 = tpu.matmul %81, %83, %cst_76 {dimension_numbers = #tpu.dot_dimension_numbers<[1], [0], [0], [1], [0, 0, 1, 1], [], []>} : vector<48x7xbf16>, vector<7x128xbf16>, vector<48x128xf32> -> vector<48x128xf32>
    %85 = arith.addf %80, %84 : vector<48x128xf32>
    %c0_77 = arith.constant 0 : index
    %c0_78 = arith.constant 0 : index
    %c0_79 = arith.constant 0 : index
    %86 = vector.load %arg5[%c0_77, %c0_78, %c0_79] : memref<2x48x128xf32, #tpu.memory_space<vmem>>, vector<1x48x128xf32>
    %87 = vector.shape_cast %86 : vector<1x48x128xf32> to vector<48x128xf32>
    %88 = vector.shape_cast %85 : vector<48x128xf32> to vector<1x48x128xf32>
    tpu.vector_store %arg5[%c0_77, %c0_78, %c0_79], %88 {strides = array<i32>} : memref<2x48x128xf32, #tpu.memory_space<vmem>>, vector<1x48x128xf32>,
    %c1_80 = arith.constant 1 : index
    %c0_81 = arith.constant 0 : index
    %c0_82 = arith.constant 0 : index
    %89 = vector.load %arg1[%c1_80, %c0_81, %c0_82] : memref<2x64x7xbf16, #tpu.memory_space<vmem>>, vector<1x64x7xbf16>
    %90 = vector.shape_cast %89 : vector<1x64x7xbf16> to vector<64x7xbf16>
    %91 = vector.extract_strided_slice %90 {offsets = [0, 0], sizes = [48, 7], strides = [1, 1]} : vector<64x7xbf16> to vector<48x7xbf16>
    %c0_83 = arith.constant 0 : index
    %c0_84 = arith.constant 0 : index
    %c0_85 = arith.constant 0 : index
    %92 = vector.load %arg2[%c0_83, %c0_84, %c0_85] : memref<9x7x128xbf16, #tpu.memory_space<vmem>>, vector<1x7x128xbf16>
    %93 = vector.shape_cast %92 : vector<1x7x128xbf16> to vector<7x128xbf16>
    %cst_86 = arith.constant dense<0.000000e+00> : vector<48x128xf32>
    %94 = tpu.matmul %91, %93, %cst_86 {dimension_numbers = #tpu.dot_dimension_numbers<[1], [0], [0], [1], [0, 0, 1, 1], [], []>} : vector<48x7xbf16>, vector<7x128xbf16>, vector<48x128xf32> -> vector<48x128xf32>
    %c1_87 = arith.constant 1 : index
    %c0_88 = arith.constant 0 : index
    %c0_89 = arith.constant 0 : index
    %95 = vector.load %arg5[%c1_87, %c0_88, %c0_89] : memref<2x48x128xf32, #tpu.memory_space<vmem>>, vector<1x48x128xf32>
    %96 = vector.shape_cast %95 : vector<1x48x128xf32> to vector<48x128xf32>
    %97 = vector.shape_cast %94 : vector<48x128xf32> to vector<1x48x128xf32>
    tpu.vector_store %arg5[%c1_87, %c0_88, %c0_89], %97 {strides = array<i32>} : memref<2x48x128xf32, #tpu.memory_space<vmem>>, vector<1x48x128xf32>,
    %c1_90 = arith.constant 1 : index
    %c0_91 = arith.constant 0 : index
    %c0_92 = arith.constant 0 : index
    %98 = vector.load %arg5[%c1_90, %c0_91, %c0_92] : memref<2x48x128xf32, #tpu.memory_space<vmem>>, vector<1x48x128xf32>
    %99 = vector.shape_cast %98 : vector<1x48x128xf32> to vector<48x128xf32>
    %100 = vector.extract_strided_slice %90 {offsets = [1, 0], sizes = [48, 7], strides = [1, 1]} : vector<64x7xbf16> to vector<48x7xbf16>
    %c1_93 = arith.constant 1 : index
    %c0_94 = arith.constant 0 : index
    %c0_95 = arith.constant 0 : index
    %101 = vector.load %arg2[%c1_93, %c0_94, %c0_95] : memref<9x7x128xbf16, #tpu.memory_space<vmem>>, vector<1x7x128xbf16>
    %102 = vector.shape_cast %101 : vector<1x7x128xbf16> to vector<7x128xbf16>
    %cst_96 = arith.constant dense<0.000000e+00> : vector<48x128xf32>
    %103 = tpu.matmul %100, %102, %cst_96 {dimension_numbers = #tpu.dot_dimension_numbers<[1], [0], [0], [1], [0, 0, 1, 1], [], []>} : vector<48x7xbf16>, vector<7x128xbf16>, vector<48x128xf32> -> vector<48x128xf32>
    %104 = arith.addf %99, %103 : vector<48x128xf32>
    %c1_97 = arith.constant 1 : index
    %c0_98 = arith.constant 0 : index
    %c0_99 = arith.constant 0 : index
    %105 = vector.load %arg5[%c1_97, %c0_98, %c0_99] : memref<2x48x128xf32, #tpu.memory_space<vmem>>, vector<1x48x128xf32>
    %106 = vector.shape_cast %105 : vector<1x48x128xf32> to vector<48x128xf32>
    %107 = vector.shape_cast %104 : vector<48x128xf32> to vector<1x48x128xf32>
    tpu.vector_store %arg5[%c1_97, %c0_98, %c0_99], %107 {strides = array<i32>} : memref<2x48x128xf32, #tpu.memory_space<vmem>>, vector<1x48x128xf32>,
    %c1_100 = arith.constant 1 : index
    %c0_101 = arith.constant 0 : index
    %c0_102 = arith.constant 0 : index
    %108 = vector.load %arg5[%c1_100, %c0_101, %c0_102] : memref<2x48x128xf32, #tpu.memory_space<vmem>>, vector<1x48x128xf32>
    %109 = vector.shape_cast %108 : vector<1x48x128xf32> to vector<48x128xf32>
    %110 = vector.extract_strided_slice %90 {offsets = [2, 0], sizes = [48, 7], strides = [1, 1]} : vector<64x7xbf16> to vector<48x7xbf16>
    %c2_103 = arith.constant 2 : index
    %c0_104 = arith.constant 0 : index
    %c0_105 = arith.constant 0 : index
    %111 = vector.load %arg2[%c2_103, %c0_104, %c0_105] : memref<9x7x128xbf16, #tpu.memory_space<vmem>>, vector<1x7x128xbf16>
    %112 = vector.shape_cast %111 : vector<1x7x128xbf16> to vector<7x128xbf16>
    %cst_106 = arith.constant dense<0.000000e+00> : vector<48x128xf32>
    %113 = tpu.matmul %110, %112, %cst_106 {dimension_numbers = #tpu.dot_dimension_numbers<[1], [0], [0], [1], [0, 0, 1, 1], [], []>} : vector<48x7xbf16>, vector<7x128xbf16>, vector<48x128xf32> -> vector<48x128xf32>
    %114 = arith.addf %109, %113 : vector<48x128xf32>
    %c1_107 = arith.constant 1 : index
    %c0_108 = arith.constant 0 : index
    %c0_109 = arith.constant 0 : index
    %115 = vector.load %arg5[%c1_107, %c0_108, %c0_109] : memref<2x48x128xf32, #tpu.memory_space<vmem>>, vector<1x48x128xf32>
    %116 = vector.shape_cast %115 : vector<1x48x128xf32> to vector<48x128xf32>
    %117 = vector.shape_cast %114 : vector<48x128xf32> to vector<1x48x128xf32>
    tpu.vector_store %arg5[%c1_107, %c0_108, %c0_109], %117 {strides = array<i32>} : memref<2x48x128xf32, #tpu.memory_space<vmem>>, vector<1x48x128xf32>,
    %c1_110 = arith.constant 1 : index
    %c0_111 = arith.constant 0 : index
    %c0_112 = arith.constant 0 : index
    %118 = vector.load %arg5[%c1_110, %c0_111, %c0_112] : memref<2x48x128xf32, #tpu.memory_space<vmem>>, vector<1x48x128xf32>
    %119 = vector.shape_cast %118 : vector<1x48x128xf32> to vector<48x128xf32>
    %120 = vector.extract_strided_slice %90 {offsets = [7, 0], sizes = [48, 7], strides = [1, 1]} : vector<64x7xbf16> to vector<48x7xbf16>
    %c3_113 = arith.constant 3 : index
    %c0_114 = arith.constant 0 : index
    %c0_115 = arith.constant 0 : index
    %121 = vector.load %arg2[%c3_113, %c0_114, %c0_115] : memref<9x7x128xbf16, #tpu.memory_space<vmem>>, vector<1x7x128xbf16>
    %122 = vector.shape_cast %121 : vector<1x7x128xbf16> to vector<7x128xbf16>
    %cst_116 = arith.constant dense<0.000000e+00> : vector<48x128xf32>
    %123 = tpu.matmul %120, %122, %cst_116 {dimension_numbers = #tpu.dot_dimension_numbers<[1], [0], [0], [1], [0, 0, 1, 1], [], []>} : vector<48x7xbf16>, vector<7x128xbf16>, vector<48x128xf32> -> vector<48x128xf32>
    %124 = arith.addf %119, %123 : vector<48x128xf32>
    %c1_117 = arith.constant 1 : index
    %c0_118 = arith.constant 0 : index
    %c0_119 = arith.constant 0 : index
    %125 = vector.load %arg5[%c1_117, %c0_118, %c0_119] : memref<2x48x128xf32, #tpu.memory_space<vmem>>, vector<1x48x128xf32>
    %126 = vector.shape_cast %125 : vector<1x48x128xf32> to vector<48x128xf32>
    %127 = vector.shape_cast %124 : vector<48x128xf32> to vector<1x48x128xf32>
    tpu.vector_store %arg5[%c1_117, %c0_118, %c0_119], %127 {strides = array<i32>} : memref<2x48x128xf32, #tpu.memory_space<vmem>>, vector<1x48x128xf32>,
    %c1_120 = arith.constant 1 : index
    %c0_121 = arith.constant 0 : index
    %c0_122 = arith.constant 0 : index
    %128 = vector.load %arg5[%c1_120, %c0_121, %c0_122] : memref<2x48x128xf32, #tpu.memory_space<vmem>>, vector<1x48x128xf32>
    %129 = vector.shape_cast %128 : vector<1x48x128xf32> to vector<48x128xf32>
    %130 = vector.extract_strided_slice %90 {offsets = [8, 0], sizes = [48, 7], strides = [1, 1]} : vector<64x7xbf16> to vector<48x7xbf16>
    %c4_123 = arith.constant 4 : index
    %c0_124 = arith.constant 0 : index
    %c0_125 = arith.constant 0 : index
    %131 = vector.load %arg2[%c4_123, %c0_124, %c0_125] : memref<9x7x128xbf16, #tpu.memory_space<vmem>>, vector<1x7x128xbf16>
    %132 = vector.shape_cast %131 : vector<1x7x128xbf16> to vector<7x128xbf16>
    %cst_126 = arith.constant dense<0.000000e+00> : vector<48x128xf32>
    %133 = tpu.matmul %130, %132, %cst_126 {dimension_numbers = #tpu.dot_dimension_numbers<[1], [0], [0], [1], [0, 0, 1, 1], [], []>} : vector<48x7xbf16>, vector<7x128xbf16>, vector<48x128xf32> -> vector<48x128xf32>
    %134 = arith.addf %129, %133 : vector<48x128xf32>
    %c1_127 = arith.constant 1 : index
    %c0_128 = arith.constant 0 : index
    %c0_129 = arith.constant 0 : index
    %135 = vector.load %arg5[%c1_127, %c0_128, %c0_129] : memref<2x48x128xf32, #tpu.memory_space<vmem>>, vector<1x48x128xf32>
    %136 = vector.shape_cast %135 : vector<1x48x128xf32> to vector<48x128xf32>
    %137 = vector.shape_cast %134 : vector<48x128xf32> to vector<1x48x128xf32>
    tpu.vector_store %arg5[%c1_127, %c0_128, %c0_129], %137 {strides = array<i32>} : memref<2x48x128xf32, #tpu.memory_space<vmem>>, vector<1x48x128xf32>,
    %c1_130 = arith.constant 1 : index
    %c0_131 = arith.constant 0 : index
    %c0_132 = arith.constant 0 : index
    %138 = vector.load %arg5[%c1_130, %c0_131, %c0_132] : memref<2x48x128xf32, #tpu.memory_space<vmem>>, vector<1x48x128xf32>
    %139 = vector.shape_cast %138 : vector<1x48x128xf32> to vector<48x128xf32>
    %140 = vector.extract_strided_slice %90 {offsets = [9, 0], sizes = [48, 7], strides = [1, 1]} : vector<64x7xbf16> to vector<48x7xbf16>
    %c5_133 = arith.constant 5 : index
    %c0_134 = arith.constant 0 : index
    %c0_135 = arith.constant 0 : index
    %141 = vector.load %arg2[%c5_133, %c0_134, %c0_135] : memref<9x7x128xbf16, #tpu.memory_space<vmem>>, vector<1x7x128xbf16>
    %142 = vector.shape_cast %141 : vector<1x7x128xbf16> to vector<7x128xbf16>
    %cst_136 = arith.constant dense<0.000000e+00> : vector<48x128xf32>
    %143 = tpu.matmul %140, %142, %cst_136 {dimension_numbers = #tpu.dot_dimension_numbers<[1], [0], [0], [1], [0, 0, 1, 1], [], []>} : vector<48x7xbf16>, vector<7x128xbf16>, vector<48x128xf32> -> vector<48x128xf32>
    %144 = arith.addf %139, %143 : vector<48x128xf32>
    %c1_137 = arith.constant 1 : index
    %c0_138 = arith.constant 0 : index
    %c0_139 = arith.constant 0 : index
    %145 = vector.load %arg5[%c1_137, %c0_138, %c0_139] : memref<2x48x128xf32, #tpu.memory_space<vmem>>, vector<1x48x128xf32>
    %146 = vector.shape_cast %145 : vector<1x48x128xf32> to vector<48x128xf32>
    %147 = vector.shape_cast %144 : vector<48x128xf32> to vector<1x48x128xf32>
    tpu.vector_store %arg5[%c1_137, %c0_138, %c0_139], %147 {strides = array<i32>} : memref<2x48x128xf32, #tpu.memory_space<vmem>>, vector<1x48x128xf32>,
    %c1_140 = arith.constant 1 : index
    %c0_141 = arith.constant 0 : index
    %c0_142 = arith.constant 0 : index
    %148 = vector.load %arg5[%c1_140, %c0_141, %c0_142] : memref<2x48x128xf32, #tpu.memory_space<vmem>>, vector<1x48x128xf32>
    %149 = vector.shape_cast %148 : vector<1x48x128xf32> to vector<48x128xf32>
    %150 = vector.extract_strided_slice %90 {offsets = [14, 0], sizes = [48, 7], strides = [1, 1]} : vector<64x7xbf16> to vector<48x7xbf16>
    %c6_143 = arith.constant 6 : index
    %c0_144 = arith.constant 0 : index
    %c0_145 = arith.constant 0 : index
    %151 = vector.load %arg2[%c6_143, %c0_144, %c0_145] : memref<9x7x128xbf16, #tpu.memory_space<vmem>>, vector<1x7x128xbf16>
    %152 = vector.shape_cast %151 : vector<1x7x128xbf16> to vector<7x128xbf16>
    %cst_146 = arith.constant dense<0.000000e+00> : vector<48x128xf32>
    %153 = tpu.matmul %150, %152, %cst_146 {dimension_numbers = #tpu.dot_dimension_numbers<[1], [0], [0], [1], [0, 0, 1, 1], [], []>} : vector<48x7xbf16>, vector<7x128xbf16>, vector<48x128xf32> -> vector<48x128xf32>
    %154 = arith.addf %149, %153 : vector<48x128xf32>
    %c1_147 = arith.constant 1 : index
    %c0_148 = arith.constant 0 : index
    %c0_149 = arith.constant 0 : index
    %155 = vector.load %arg5[%c1_147, %c0_148, %c0_149] : memref<2x48x128xf32, #tpu.memory_space<vmem>>, vector<1x48x128xf32>
    %156 = vector.shape_cast %155 : vector<1x48x128xf32> to vector<48x128xf32>
    %157 = vector.shape_cast %154 : vector<48x128xf32> to vector<1x48x128xf32>
    tpu.vector_store %arg5[%c1_147, %c0_148, %c0_149], %157 {strides = array<i32>} : memref<2x48x128xf32, #tpu.memory_space<vmem>>, vector<1x48x128xf32>,
    %c1_150 = arith.constant 1 : index
    %c0_151 = arith.constant 0 : index
    %c0_152 = arith.constant 0 : index
    %158 = vector.load %arg5[%c1_150, %c0_151, %c0_152] : memref<2x48x128xf32, #tpu.memory_space<vmem>>, vector<1x48x128xf32>
    %159 = vector.shape_cast %158 : vector<1x48x128xf32> to vector<48x128xf32>
    %160 = vector.extract_strided_slice %90 {offsets = [15, 0], sizes = [48, 7], strides = [1, 1]} : vector<64x7xbf16> to vector<48x7xbf16>
    %c7_153 = arith.constant 7 : index
    %c0_154 = arith.constant 0 : index
    %c0_155 = arith.constant 0 : index
    %161 = vector.load %arg2[%c7_153, %c0_154, %c0_155] : memref<9x7x128xbf16, #tpu.memory_space<vmem>>, vector<1x7x128xbf16>
    %162 = vector.shape_cast %161 : vector<1x7x128xbf16> to vector<7x128xbf16>
    %cst_156 = arith.constant dense<0.000000e+00> : vector<48x128xf32>
    %163 = tpu.matmul %160, %162, %cst_156 {dimension_numbers = #tpu.dot_dimension_numbers<[1], [0], [0], [1], [0, 0, 1, 1], [], []>} : vector<48x7xbf16>, vector<7x128xbf16>, vector<48x128xf32> -> vector<48x128xf32>
    %164 = arith.addf %159, %163 : vector<48x128xf32>
    %c1_157 = arith.constant 1 : index
    %c0_158 = arith.constant 0 : index
    %c0_159 = arith.constant 0 : index
    %165 = vector.load %arg5[%c1_157, %c0_158, %c0_159] : memref<2x48x128xf32, #tpu.memory_space<vmem>>, vector<1x48x128xf32>
    %166 = vector.shape_cast %165 : vector<1x48x128xf32> to vector<48x128xf32>
    %167 = vector.shape_cast %164 : vector<48x128xf32> to vector<1x48x128xf32>
    tpu.vector_store %arg5[%c1_157, %c0_158, %c0_159], %167 {strides = array<i32>} : memref<2x48x128xf32, #tpu.memory_space<vmem>>, vector<1x48x128xf32>,
    %c1_160 = arith.constant 1 : index
    %c0_161 = arith.constant 0 : index
    %c0_162 = arith.constant 0 : index
    %168 = vector.load %arg5[%c1_160, %c0_161, %c0_162] : memref<2x48x128xf32, #tpu.memory_space<vmem>>, vector<1x48x128xf32>
    %169 = vector.shape_cast %168 : vector<1x48x128xf32> to vector<48x128xf32>
    %170 = vector.extract_strided_slice %90 {offsets = [16, 0], sizes = [48, 7], strides = [1, 1]} : vector<64x7xbf16> to vector<48x7xbf16>
    %c8_163 = arith.constant 8 : index
    %c0_164 = arith.constant 0 : index
    %c0_165 = arith.constant 0 : index
    %171 = vector.load %arg2[%c8_163, %c0_164, %c0_165] : memref<9x7x128xbf16, #tpu.memory_space<vmem>>, vector<1x7x128xbf16>
    %172 = vector.shape_cast %171 : vector<1x7x128xbf16> to vector<7x128xbf16>
    %cst_166 = arith.constant dense<0.000000e+00> : vector<48x128xf32>
    %173 = tpu.matmul %170, %172, %cst_166 {dimension_numbers = #tpu.dot_dimension_numbers<[1], [0], [0], [1], [0, 0, 1, 1], [], []>} : vector<48x7xbf16>, vector<7x128xbf16>, vector<48x128xf32> -> vector<48x128xf32>
    %174 = arith.addf %169, %173 : vector<48x128xf32>
    %c1_167 = arith.constant 1 : index
    %c0_168 = arith.constant 0 : index
    %c0_169 = arith.constant 0 : index
    %175 = vector.load %arg5[%c1_167, %c0_168, %c0_169] : memref<2x48x128xf32, #tpu.memory_space<vmem>>, vector<1x48x128xf32>
    %176 = vector.shape_cast %175 : vector<1x48x128xf32> to vector<48x128xf32>
    %177 = vector.shape_cast %174 : vector<48x128xf32> to vector<1x48x128xf32>
    tpu.vector_store %arg5[%c1_167, %c0_168, %c0_169], %177 {strides = array<i32>} : memref<2x48x128xf32, #tpu.memory_space<vmem>>, vector<1x48x128xf32>,
    %c0_170 = arith.constant 0 : index
    %c0_171 = arith.constant 0 : index
    %178 = vector.load %arg3[%c0_170, %c0_171] : memref<48x1xf32, #tpu.memory_space<vmem>>, vector<48x1xf32>
    %cst_172 = arith.constant 0.000000e+00 : f32
    %179 = vector.broadcast %cst_172 : f32 to vector<1x128xf32>
    %cst_173 = arith.constant 0.000000e+00 : f32
    %180 = vector.broadcast %cst_173 : f32 to vector<1x128xf32>
    %c0_174 = arith.constant 0 : index
    %c0_175 = arith.constant 0 : index
    %c0_176 = arith.constant 0 : index
    %181 = vector.load %arg5[%c0_174, %c0_175, %c0_176] : memref<2x48x128xf32, #tpu.memory_space<vmem>>, vector<1x48x128xf32>
    %182 = vector.shape_cast %181 : vector<1x48x128xf32> to vector<48x128xf32>
    %183 = vector.broadcast %178 : vector<48x1xf32> to vector<48x128xf32>
    %184 = arith.mulf %182, %183 : vector<48x128xf32>
    %cst_177 = arith.constant dense<0.000000e+00> : vector<128xf32>
    %185 = vector.multi_reduction <add>, %184, %cst_177 [0] : vector<48x128xf32> to vector<128xf32>
    %186 = vector.shape_cast %185 : vector<128xf32> to vector<1x128xf32>
    %187 = arith.addf %179, %186 : vector<1x128xf32>
    %188 = arith.mulf %184, %184 : vector<48x128xf32>
    %cst_178 = arith.constant dense<0.000000e+00> : vector<128xf32>
    %189 = vector.multi_reduction <add>, %188, %cst_178 [0] : vector<48x128xf32> to vector<128xf32>
    %190 = vector.shape_cast %189 : vector<128xf32> to vector<1x128xf32>
    %191 = arith.addf %180, %190 : vector<1x128xf32>
    %c1_179 = arith.constant 1 : index
    %c0_180 = arith.constant 0 : index
    %c0_181 = arith.constant 0 : index
    %192 = vector.load %arg5[%c1_179, %c0_180, %c0_181] : memref<2x48x128xf32, #tpu.memory_space<vmem>>, vector<1x48x128xf32>
    %193 = vector.shape_cast %192 : vector<1x48x128xf32> to vector<48x128xf32>
    %194 = vector.broadcast %178 : vector<48x1xf32> to vector<48x128xf32>
    %195 = arith.mulf %193, %194 : vector<48x128xf32>
    %cst_182 = arith.constant dense<0.000000e+00> : vector<128xf32>
    %196 = vector.multi_reduction <add>, %195, %cst_182 [0] : vector<48x128xf32> to vector<128xf32>
    %197 = vector.shape_cast %196 : vector<128xf32> to vector<1x128xf32>
    %198 = arith.addf %187, %197 : vector<1x128xf32>
    %199 = arith.mulf %195, %195 : vector<48x128xf32>
    %cst_183 = arith.constant dense<0.000000e+00> : vector<128xf32>
    %200 = vector.multi_reduction <add>, %199, %cst_183 [0] : vector<48x128xf32> to vector<128xf32>
    %201 = vector.shape_cast %200 : vector<128xf32> to vector<1x128xf32>
    %202 = arith.addf %191, %201 : vector<1x128xf32>
    %cst_184 = arith.constant 0.0166666675 : f32
    %203 = vector.broadcast %cst_184 : f32 to vector<1x128xf32>
    %204 = arith.mulf %198, %203 : vector<1x128xf32>
    %cst_185 = arith.constant 0.0166666675 : f32
    %205 = vector.broadcast %cst_185 : f32 to vector<1x128xf32>
    %206 = arith.mulf %202, %205 : vector<1x128xf32>
    %207 = arith.mulf %204, %204 : vector<1x128xf32>
    %208 = arith.subf %206, %207 : vector<1x128xf32>
    %cst_186 = arith.constant 0.000000e+00 : f32
    %209 = vector.broadcast %cst_186 : f32 to vector<1x128xf32>
    %210 = arith.maximumf %208, %209 : vector<1x128xf32>
    %cst_187 = arith.constant 9.99999974E-6 : f32
    %211 = vector.broadcast %cst_187 : f32 to vector<1x128xf32>
    %212 = arith.addf %210, %211 : vector<1x128xf32>
    %213 = math.rsqrt %212 : vector<1x128xf32>
    %c0_188 = arith.constant 0 : index
    %c0_189 = arith.constant 0 : index
    %c0_190 = arith.constant 0 : index
    %214 = vector.load %arg5[%c0_188, %c0_189, %c0_190] : memref<2x48x128xf32, #tpu.memory_space<vmem>>, vector<1x48x128xf32>
    %215 = vector.shape_cast %214 : vector<1x48x128xf32> to vector<48x128xf32>
    %216 = vector.broadcast %204 : vector<1x128xf32> to vector<48x128xf32>
    %217 = arith.subf %215, %216 : vector<48x128xf32>
    %218 = vector.broadcast %213 : vector<1x128xf32> to vector<48x128xf32>
    %219 = arith.mulf %217, %218 : vector<48x128xf32>
    %cst_191 = arith.constant 0.000000e+00 : f32
    %220 = vector.broadcast %cst_191 : f32 to vector<48x128xf32>
    %221 = arith.maximumf %219, %220 : vector<48x128xf32>
    %222 = arith.truncf %221 : vector<48x128xf32> to vector<48x128xbf16>
    %c0_192 = arith.constant 0 : index
    %c0_193 = arith.constant 0 : index
    %c0_194 = arith.constant 0 : index
    %223 = vector.load %arg4[%c0_192, %c0_193, %c0_194] : memref<2x48x128xbf16, #tpu.memory_space<vmem>>, vector<1x48x128xbf16>
    %224 = vector.shape_cast %223 : vector<1x48x128xbf16> to vector<48x128xbf16>
    %225 = vector.shape_cast %222 : vector<48x128xbf16> to vector<1x48x128xbf16>
    tpu.vector_store %arg4[%c0_192, %c0_193, %c0_194], %225 {strides = array<i32>} : memref<2x48x128xbf16, #tpu.memory_space<vmem>>, vector<1x48x128xbf16>,
    %c1_195 = arith.constant 1 : index
    %c0_196 = arith.constant 0 : index
    %c0_197 = arith.constant 0 : index
    %226 = vector.load %arg5[%c1_195, %c0_196, %c0_197] : memref<2x48x128xf32, #tpu.memory_space<vmem>>, vector<1x48x128xf32>
    %227 = vector.shape_cast %226 : vector<1x48x128xf32> to vector<48x128xf32>
    %228 = vector.broadcast %204 : vector<1x128xf32> to vector<48x128xf32>
    %229 = arith.subf %227, %228 : vector<48x128xf32>
    %230 = vector.broadcast %213 : vector<1x128xf32> to vector<48x128xf32>
    %231 = arith.mulf %229, %230 : vector<48x128xf32>
    %cst_198 = arith.constant 0.000000e+00 : f32
    %232 = vector.broadcast %cst_198 : f32 to vector<48x128xf32>
    %233 = arith.maximumf %231, %232 : vector<48x128xf32>
    %234 = arith.truncf %233 : vector<48x128xf32> to vector<48x128xbf16>
    %c1_199 = arith.constant 1 : index
    %c0_200 = arith.constant 0 : index
    %c0_201 = arith.constant 0 : index
    %235 = vector.load %arg4[%c1_199, %c0_200, %c0_201] : memref<2x48x128xbf16, #tpu.memory_space<vmem>>, vector<1x48x128xbf16>
    %236 = vector.shape_cast %235 : vector<1x48x128xbf16> to vector<48x128xbf16>
    %237 = vector.shape_cast %234 : vector<48x128xbf16> to vector<1x48x128xbf16>
    tpu.vector_store %arg4[%c1_199, %c0_200, %c0_201], %237 {strides = array<i32>} : memref<2x48x128xbf16, #tpu.memory_space<vmem>>, vector<1x48x128xbf16>,
    return
  }
  func.func @transform_0(%arg0: i32) -> (i32, i32, i32) {
    %c0_i32 = arith.constant 0 : i32
    %c0_i32_0 = arith.constant 0 : i32
    %c0_i32_1 = arith.constant 0 : i32
    %c0_i32_2 = arith.constant 0 : i32
    return %c0_i32, %c0_i32_0, %c0_i32_1 : i32, i32, i32
  }
  func.func @transform_1(%arg0: i32) -> (i32, i32, i32) {
    %c0_i32 = arith.constant 0 : i32
    %c0_i32_0 = arith.constant 0 : i32
    %c0_i32_1 = arith.constant 0 : i32
    %c0_i32_2 = arith.constant 0 : i32
    return %c0_i32, %c0_i32_0, %c0_i32_1 : i32, i32, i32
  }
  func.func @transform_2(%arg0: i32) -> (i32, i32) {
    %c0_i32 = arith.constant 0 : i32
    %c0_i32_0 = arith.constant 0 : i32
    %c0_i32_1 = arith.constant 0 : i32
    return %c0_i32, %c0_i32_0 : i32, i32
  }
  func.func @transform_3(%arg0: i32) -> (i32, i32, i32) {
    %c0_i32 = arith.constant 0 : i32
    %c0_i32_0 = arith.constant 0 : i32
    %c0_i32_1 = arith.constant 0 : i32
    %c0_i32_2 = arith.constant 0 : i32
    return %c0_i32, %c0_i32_0, %c0_i32_1 : i32, i32, i32
  }
}

</mosaic_0001>

<llo_original>
// kernel: tpu_custom_call.1
$region0: #{tpu_custom_call.1}
  #allocation0 [shape = 'u32[]', space=smem, size = 0x4, offset = 0x4, fixed_abs, tag = 'smem constant byte address 0x4 - core index']
  #allocation1 [shape = 'u32[144,128]{1,0:T(1,128)}', space=vmem, size = 0x12000, scoped, tag = 'internal scratch']
  #allocation2 [shape = 'f32[2,48,128]{2,1,0:T(8,128)}', space=vmem, size = 0xc000, scoped, tag = 'scratch operand']
  %s0 = inlined_call_operand.vmem [shape: bf16[2,64,7], index: 0, kind: input, shape index: {}]
  %s1 = inlined_call_operand.vmem [shape: bf16[9,7,128], index: 1, kind: input, shape index: {}]
  %s2 = inlined_call_operand.vmem [shape: f32[48,1], index: 2, kind: input, shape index: {}]
  %s3 = inlined_call_operand.hbm [shape: bf16[2,48,128], index: 3, kind: output, shape index: {}]
  %s4 = sld [smem:[#allocation0]]
  $region22: #{tpu_custom_call.1} parent=0
    _
  %s6 = ssub.s32 1, %s4
  %s7 = scalar_select 0, %s6, %s4
  $region1: #{tpu_custom_call.1} parent=0
    #allocation3 [shape = 'u8[24576]{0}', space=vmem, size = 0x6000, scoped, tag = 'output window, operand 0, single buffered']
    #allocation4 [shape = 's32[1]{0}', space=sflag, size = 0x4, scoped, tag = 'scoped memory for tpu_custom_call.1']
    %8 = vsyncpa [#allocation4], 0
    // Predicated region
    $region2: #{tpu_custom_call.1} parent=1 // pred_check
      _
    $region3: #{tpu_custom_call.1} parent=1 // pred_check_branch
      %10 = sbr.rel (0) target = $region5
    $region4: #{tpu_custom_call.1} parent=1 // pred_region
      _
    $region5: #{tpu_custom_call.1} parent=1 // pred_fallthru
      _
    // Predicated region
    $region6: #{tpu_custom_call.1} parent=1 // pred_check
      _
    $region7: #{tpu_custom_call.1} parent=1 // pred_check_branch
      %12 = sbr.rel (0) target = $region9
    $region8: #{tpu_custom_call.1} parent=1 // pred_region
      _
    $region9: #{tpu_custom_call.1} parent=1 // pred_fallthru
      _
    // Predicated region
    $region10: #{tpu_custom_call.1} parent=1 // pred_check
      _
    $region11: #{tpu_custom_call.1} parent=1 // pred_check_branch
      %14 = sbr.rel (0) target = $region13
    $region12: #{tpu_custom_call.1} parent=1 // pred_region
      _
    $region13: #{tpu_custom_call.1} parent=1 // pred_fallthru
      _
    %v16 = vld [vmem:[%s0] sm:$0xf]
    %v17 = vld [vmem:[%s0 + $0x4] sm:$0xf]
    %v18 = vld [vmem:[%s0 + $0x8] sm:$0xf]
    %v19 = vld [vmem:[%s0 + $0xc] sm:$0xf]
    %v20 = vld [vmem:[%s0 + $0x10] sm:$0xf]
    %v21 = vld [vmem:[%s0 + $0x14] sm:$0xf]
    %v22 = vld [vmem:[%s0 + $0x18] sm:$0xf]
    %v23 = vld [vmem:[%s0 + $0x1c] sm:$0xf]
    %v24 = vld [vmem:[%s1] sm:$0xf]
    %v31 = vunpack.c.l.b16 %v16
    %v32 = vunpack.c.l.b16 %v17
    %v33 = vunpack.c.l.b16 %v18
    %v34 = vunpack.c.l.b16 %v19
    %v35 = vunpack.c.l.b16 %v20
    %v36 = vunpack.c.l.b16 %v21
    %v37 = vpack.c.b16 %v32, %v31
    %v38 = vpack.c.b16 %v34, %v33
    %v39 = vpack.c.b16 %v36, %v35
    %vm40 = vcmask 56320
    %v42 = vsel %vm40, %v37, 0
    %v45 = vsel %vm40, %v38, 0
    %v48 = vsel %vm40, %v39, 0
    %vm50 = vcmask 1042432
    %vm51 = vcmask 1043456
    %v52 = vsel %vm50, 4294967295, 65535
    %v53 = vsel %vm51, %v52, 0
    %v55 = vand.u32 %v24, %v53
    %57 = vmatprep.subr.bf16.mxu0 0
    %58 = vmatpush1.bf16.msra.mxu0 %v55
    %59 = vmatprep.subr.bf16.mxu0 0
    %60 = vmatpush1.bf16.msra.mxu0 0
    %61 = vmatprep.subr.bf16.mxu0 0
    %62 = vmatpush1.bf16.msra.mxu0 0
    %63 = vmatprep.subr.bf16.mxu0 0
    %64 = vmatpush1.bf16.msra.mxu0 0
    %65 = vmatprep.subr.bf16.mxu0 0
    %66 = vmatpush1.bf16.msra.mxu0 0
    %67 = vmatprep.subr.bf16.mxu0 0
    %68 = vmatpush1.bf16.msra.mxu0 0
    %69 = vmatprep.subr.bf16.mxu0 0
    %70 = vmatpush1.bf16.msra.mxu0 0
    %71 = vmatprep.subr.bf16.mxu0 0
    %72 = vmatpush1.bf16.msra.mxu0 0
    %73 = vmatprep.subr.bf16.mxu0 0
    %74 = vmatpush1.bf16.msra.mxu0 0
    %75 = vmatprep.subr.bf16.mxu0 0
    %76 = vmatpush1.bf16.msra.mxu0 0
    %77 = vmatprep.subr.bf16.mxu0 0
    %78 = vmatpush1.bf16.msra.mxu0 0
    %79 = vmatprep.subr.bf16.mxu0 0
    %80 = vmatpush1.bf16.msra.mxu0 0
    %81 = vmatprep.subr.bf16.mxu0 0
    %82 = vmatpush1.bf16.msra.mxu0 0
    %83 = vmatprep.subr.bf16.mxu0 0
    %84 = vmatpush1.bf16.msra.mxu0 0
    %85 = vmatprep.subr.bf16.mxu0 0
    %86 = vmatpush1.bf16.msra.mxu0 0
    %87 = vmatprep.subr.bf16.mxu0 0
    %88 = vmatpush1.bf16.msra.mxu0 0
    %89 = vmatprep.mubr.bf16.mxu0 0
    %90 = vmatmul.mubr.bf16.gmra.mrb[0].mxu0 %v42
    %v91 = vpop.f32.mrb[0].mxu0
    %v92 = vadd.f32 0.0, %v91
    %v93 = vpop.f32.mrb[0].mxu0
    %v94 = vpop.f32.mrb[0].mxu0
    %v95 = vadd.f32 0.0, %v94
    %v96 = vpop.f32.mrb[0].mxu0
    %97 = vmatprep.mubr.bf16.mxu0 0
    %98 = vmatmul.mubr.bf16.gmra.mrb[0].mxu0 %v45
    %v99 = vpop.f32.mrb[0].mxu0
    %v100 = vadd.f32 0.0, %v99
    %v101 = vpop.f32.mrb[0].mxu0
    %v102 = vpop.f32.mrb[0].mxu0
    %v103 = vadd.f32 0.0, %v102
    %v104 = vpop.f32.mrb[0].mxu0
    %105 = vmatprep.mubr.bf16.mxu0 0
    %106 = vmatmul.mubr.bf16.gmra.mrb[0].mxu0 %v48
    %v107 = vpop.f32.mrb[0].mxu0
    %v108 = vadd.f32 0.0, %v107
    %v109 = vpop.f32.mrb[0].mxu0
    %v110 = vpop.f32.mrb[0].mxu0
    %v111 = vadd.f32 0.0, %v110
    %v112 = vpop.f32.mrb[0].mxu0
    %113 = vdwg.mxu0
    %114 = vst [vmem:[#allocation2] sm:$0xff] %v92
    %115 = vst [vmem:[#allocation2 + $0x8] sm:$0xff] %v95
    %116 = vst [vmem:[#allocation2 + $0x10] sm:$0xff] %v100
    %117 = vst [vmem:[#allocation2 + $0x18] sm:$0xff] %v103
    %118 = vst [vmem:[#allocation2 + $0x20] sm:$0xff] %v108
    %119 = vst [vmem:[#allocation2 + $0x28] sm:$0xff] %v111
    %v120 = vld [vmem:[#allocation2] sm:$0xff]
    %v121 = vld [vmem:[#allocation2 + $0x8] sm:$0xff]
    %v122 = vld [vmem:[#allocation2 + $0x10] sm:$0xff]
    %v123 = vld [vmem:[#allocation2 + $0x18] sm:$0xff]
    %v124 = vld [vmem:[#allocation2 + $0x20] sm:$0xff]
    %v125 = vld [vmem:[#allocation2 + $0x28] sm:$0xff]
    %s126 = scalar_lea.vmem %s1, 4
    %v127 = vld [vmem:[%s126] sm:$0xf]
    %v129 = vunpack.c.l.b16 %v22
    %v130 = vpack.c.b16 %v129, %v129
    %vm131 = vsmask.f32 7424
    %v132 = vshrl.u32 %v37, 16
    %v134 = vshll.u32 %v37, 16
    %v136 = vrot.slane %v134, 1
    %v137 = vor.u32 %v132, %v136
    %v138 = vshll.u32 %v38, 16
    %v140 = vrot.slane %v138, 1
    %v141 = vsel %vm131, %v137, %v140
    %v142 = vshrl.u32 %v38, 16
    %v144 = vor.u32 %v142, %v140
    %v145 = vshll.u32 %v39, 16
    %v147 = vrot.slane %v145, 1
    %v148 = vsel %vm131, %v144, %v147
    %v149 = vshrl.u32 %v39, 16
    %v151 = vor.u32 %v149, %v147
    %v153 = vshll.u32 %v130, 16
    %v155 = vrot.slane %v153, 1
    %v156 = vsel %vm131, %v151, %v155
    %v158 = vsel %vm40, %v141, 0
    %v161 = vsel %vm40, %v148, 0
    %v164 = vsel %vm40, %v156, 0
    %v167 = vand.u32 %v127, %v53
    %169 = vmatprep.subr.bf16.mxu0 0
    %170 = vmatpush1.bf16.msra.mxu0 %v167
    %171 = vmatprep.subr.bf16.mxu0 0
    %172 = vmatpush1.bf16.msra.mxu0 0
    %173 = vmatprep.subr.bf16.mxu0 0
    %174 = vmatpush1.bf16.msra.mxu0 0
    %175 = vmatprep.subr.bf16.mxu0 0
    %176 = vmatpush1.bf16.msra.mxu0 0
    %177 = vmatprep.subr.bf16.mxu0 0
    %178 = vmatpush1.bf16.msra.mxu0 0
    %179 = vmatprep.subr.bf16.mxu0 0
    %180 = vmatpush1.bf16.msra.mxu0 0
    %181 = vmatprep.subr.bf16.mxu0 0
    %182 = vmatpush1.bf16.msra.mxu0 0
    %183 = vmatprep.subr.bf16.mxu0 0
    %184 = vmatpush1.bf16.msra.mxu0 0
    %185 = vmatprep.subr.bf16.mxu0 0
    %186 = vmatpush1.bf16.msra.mxu0 0
    %187 = vmatprep.subr.bf16.mxu0 0
    %188 = vmatpush1.bf16.msra.mxu0 0
    %189 = vmatprep.subr.bf16.mxu0 0
    %190 = vmatpush1.bf16.msra.mxu0 0
    %191 = vmatprep.subr.bf16.mxu0 0
    %192 = vmatpush1.bf16.msra.mxu0 0
    %193 = vmatprep.subr.bf16.mxu0 0
    %194 = vmatpush1.bf16.msra.mxu0 0
    %195 = vmatprep.subr.bf16.mxu0 0
    %196 = vmatpush1.bf16.msra.mxu0 0
    %197 = vmatprep.subr.bf16.mxu0 0
    %198 = vmatpush1.bf16.msra.mxu0 0
    %199 = vmatprep.subr.bf16.mxu0 0
    %200 = vmatpush1.bf16.msra.mxu0 0
    %201 = vmatprep.mubr.bf16.mxu0 0
    %202 = vmatmul.mubr.bf16.gmra.mrb[0].mxu0 %v158
    %v203 = vpop.f32.mrb[0].mxu0
    %v204 = vadd.f32 0.0, %v203
    %v205 = vpop.f32.mrb[0].mxu0
    %v206 = vpop.f32.mrb[0].mxu0
    %v207 = vadd.f32 0.0, %v206
    %v208 = vpop.f32.mrb[0].mxu0
    %209 = vmatprep.mubr.bf16.mxu0 0
    %210 = vmatmul.mubr.bf16.gmra.mrb[0].mxu0 %v161
    %v211 = vpop.f32.mrb[0].mxu0
    %v212 = vadd.f32 0.0, %v211
    %v213 = vpop.f32.mrb[0].mxu0
    %v214 = vpop.f32.mrb[0].mxu0
    %v215 = vadd.f32 0.0, %v214
    %v216 = vpop.f32.mrb[0].mxu0
    %217 = vmatprep.mubr.bf16.mxu0 0
    %218 = vmatmul.mubr.bf16.gmra.mrb[0].mxu0 %v164
    %v219 = vpop.f32.mrb[0].mxu0
    %v220 = vadd.f32 0.0, %v219
    %v221 = vpop.f32.mrb[0].mxu0
    %v222 = vpop.f32.mrb[0].mxu0
    %v223 = vadd.f32 0.0, %v222
    %v224 = vpop.f32.mrb[0].mxu0
    %225 = vdwg.mxu0
    %v226 = vadd.f32 %v120, %v204
    %v227 = vadd.f32 %v121, %v207
    %v228 = vadd.f32 %v122, %v212
    %v229 = vadd.f32 %v123, %v215
    %v230 = vadd.f32 %v124, %v220
    %v231 = vadd.f32 %v125, %v223
    %232 = vst [vmem:[#allocation2] sm:$0xff] %v226
    %233 = vst [vmem:[#allocation2 + $0x8] sm:$0xff] %v227
    %234 = vst [vmem:[#allocation2 + $0x10] sm:$0xff] %v228
    %235 = vst [vmem:[#allocation2 + $0x18] sm:$0xff] %v229
    %236 = vst [vmem:[#allocation2 + $0x20] sm:$0xff] %v230
    %237 = vst [vmem:[#allocation2 + $0x28] sm:$0xff] %v231
    %v238 = vld [vmem:[#allocation2] sm:$0xff]
    %v239 = vld [vmem:[#allocation2 + $0x8] sm:$0xff]
    %v240 = vld [vmem:[#allocation2 + $0x10] sm:$0xff]
    %v241 = vld [vmem:[#allocation2 + $0x18] sm:$0xff]
    %v242 = vld [vmem:[#allocation2 + $0x20] sm:$0xff]
    %v243 = vld [vmem:[#allocation2 + $0x28] sm:$0xff]
    %s244 = scalar_lea.vmem %s1, 8
    %v245 = vld [vmem:[%s244] sm:$0xf]
    %vm246 = vcmask 1046528
    %v247 = vrot.slane %v37, 1
    %v248 = vrot.slane %v38, 1
    %v249 = vsel %vm246, %v247, %v248
    %v250 = vrot.slane %v39, 1
    %v251 = vsel %vm246, %v248, %v250
    %v252 = vrot.slane %v130, 1
    %v253 = vsel %vm246, %v250, %v252
    %v255 = vsel %vm40, %v249, 0
    %v258 = vsel %vm40, %v251, 0
    %v261 = vsel %vm40, %v253, 0
    %v264 = vand.u32 %v245, %v53
    %266 = vmatprep.subr.bf16.mxu0 0
    %267 = vmatpush1.bf16.msra.mxu0 %v264
    %268 = vmatprep.subr.bf16.mxu0 0
    %269 = vmatpush1.bf16.msra.mxu0 0
    %270 = vmatprep.subr.bf16.mxu0 0
    %271 = vmatpush1.bf16.msra.mxu0 0
    %272 = vmatprep.subr.bf16.mxu0 0
    %273 = vmatpush1.bf16.msra.mxu0 0
    %274 = vmatprep.subr.bf16.mxu0 0
    %275 = vmatpush1.bf16.msra.mxu0 0
    %276 = vmatprep.subr.bf16.mxu0 0
    %277 = vmatpush1.bf16.msra.mxu0 0
    %278 = vmatprep.subr.bf16.mxu0 0
    %279 = vmatpush1.bf16.msra.mxu0 0
    %280 = vmatprep.subr.bf16.mxu0 0
    %281 = vmatpush1.bf16.msra.mxu0 0
    %282 = vmatprep.subr.bf16.mxu0 0
    %283 = vmatpush1.bf16.msra.mxu0 0
    %284 = vmatprep.subr.bf16.mxu0 0
    %285 = vmatpush1.bf16.msra.mxu0 0
    %286 = vmatprep.subr.bf16.mxu0 0
    %287 = vmatpush1.bf16.msra.mxu0 0
    %288 = vmatprep.subr.bf16.mxu0 0
    %289 = vmatpush1.bf16.msra.mxu0 0
    %290 = vmatprep.subr.bf16.mxu0 0
    %291 = vmatpush1.bf16.msra.mxu0 0
    %292 = vmatprep.subr.bf16.mxu0 0
    %293 = vmatpush1.bf16.msra.mxu0 0
    %294 = vmatprep.subr.bf16.mxu0 0
    %295 = vmatpush1.bf16.msra.mxu0 0
    %296 = vmatprep.subr.bf16.mxu0 0
    %297 = vmatpush1.bf16.msra.mxu0 0
    %298 = vmatprep.mubr.bf16.mxu0 0
    %299 = vmatmul.mubr.bf16.gmra.mrb[0].mxu0 %v255
    %v300 = vpop.f32.mrb[0].mxu0
    %v301 = vadd.f32 0.0, %v300
    %v302 = vpop.f32.mrb[0].mxu0
    %v303 = vpop.f32.mrb[0].mxu0
    %v304 = vadd.f32 0.0, %v303
    %v305 = vpop.f32.mrb[0].mxu0
    %306 = vmatprep.mubr.bf16.mxu0 0
    %307 = vmatmul.mubr.bf16.gmra.mrb[0].mxu0 %v258
    %v308 = vpop.f32.mrb[0].mxu0
    %v309 = vadd.f32 0.0, %v308
    %v310 = vpop.f32.mrb[0].mxu0
    %v311 = vpop.f32.mrb[0].mxu0
    %v312 = vadd.f32 0.0, %v311
    %v313 = vpop.f32.mrb[0].mxu0
    %314 = vmatprep.mubr.bf16.mxu0 0
    %315 = vmatmul.mubr.bf16.gmra.mrb[0].mxu0 %v261
    %v316 = vpop.f32.mrb[0].mxu0
    %v317 = vadd.f32 0.0, %v316
    %v318 = vpop.f32.mrb[0].mxu0
    %v319 = vpop.f32.mrb[0].mxu0
    %v320 = vadd.f32 0.0, %v319
    %v321 = vpop.f32.mrb[0].mxu0
    %322 = vdwg.mxu0
    %v323 = vadd.f32 %v238, %v301
    %v324 = vadd.f32 %v239, %v304
    %v325 = vadd.f32 %v240, %v309
    %v326 = vadd.f32 %v241, %v312
    %v327 = vadd.f32 %v242, %v317
    %v328 = vadd.f32 %v243, %v320
    %329 = vst [vmem:[#allocation2] sm:$0xff] %v323
    %330 = vst [vmem:[#allocation2 + $0x8] sm:$0xff] %v324
    %331 = vst [vmem:[#allocation2 + $0x10] sm:$0xff] %v325
    %332 = vst [vmem:[#allocation2 + $0x18] sm:$0xff] %v326
    %333 = vst [vmem:[#allocation2 + $0x20] sm:$0xff] %v327
    %334 = vst [vmem:[#allocation2 + $0x28] sm:$0xff] %v328
    %v335 = vld [vmem:[#allocation2] sm:$0xff]
    %v336 = vld [vmem:[#allocation2 + $0x8] sm:$0xff]
    %v337 = vld [vmem:[#allocation2 + $0x10] sm:$0xff]
    %v338 = vld [vmem:[#allocation2 + $0x18] sm:$0xff]
    %v339 = vld [vmem:[#allocation2 + $0x20] sm:$0xff]
    %v340 = vld [vmem:[#allocation2 + $0x28] sm:$0xff]
    %s341 = scalar_lea.vmem %s1, 12
    %v342 = vld [vmem:[%s341] sm:$0xf]
    %vm343 = vsmask.f32 4352
    %v344 = vrot.slane %v132, 3
    %v345 = vrot.slane %v134, 4
    %v346 = vor.u32 %v344, %v345
    %v347 = vrot.slane %v142, 3
    %v348 = vrot.slane %v138, 4
    %v349 = vor.u32 %v347, %v348
    %v350 = vsel %vm343, %v346, %v349
    %v351 = vrot.slane %v149, 3
    %v352 = vrot.slane %v145, 4
    %v353 = vor.u32 %v351, %v352
    %v354 = vsel %vm343, %v349, %v353
    %v355 = vshrl.u32 %v130, 16
    %v357 = vrot.slane %v355, 3
    %v358 = vrot.slane %v153, 4
    %v359 = vor.u32 %v357, %v358
    %v360 = vsel %vm343, %v353, %v359
    %v362 = vsel %vm40, %v350, 0
    %v365 = vsel %vm40, %v354, 0
    %v368 = vsel %vm40, %v360, 0
    %v371 = vand.u32 %v342, %v53
    %373 = vmatprep.subr.bf16.mxu0 0
    %374 = vmatpush1.bf16.msra.mxu0 %v371
    %375 = vmatprep.subr.bf16.mxu0 0
    %376 = vmatpush1.bf16.msra.mxu0 0
    %377 = vmatprep.subr.bf16.mxu0 0
    %378 = vmatpush1.bf16.msra.mxu0 0
    %379 = vmatprep.subr.bf16.mxu0 0
    %380 = vmatpush1.bf16.msra.mxu0 0
    %381 = vmatprep.subr.bf16.mxu0 0
    %382 = vmatpush1.bf16.msra.mxu0 0
    %383 = vmatprep.subr.bf16.mxu0 0
    %384 = vmatpush1.bf16.msra.mxu0 0
    %385 = vmatprep.subr.bf16.mxu0 0
    %386 = vmatpush1.bf16.msra.mxu0 0
    %387 = vmatprep.subr.bf16.mxu0 0
    %388 = vmatpush1.bf16.msra.mxu0 0
    %389 = vmatprep.subr.bf16.mxu0 0
    %390 = vmatpush1.bf16.msra.mxu0 0
    %391 = vmatprep.subr.bf16.mxu0 0
    %392 = vmatpush1.bf16.msra.mxu0 0
    %393 = vmatprep.subr.bf16.mxu0 0
    %394 = vmatpush1.bf16.msra.mxu0 0
    %395 = vmatprep.subr.bf16.mxu0 0
    %396 = vmatpush1.bf16.msra.mxu0 0
    %397 = vmatprep.subr.bf16.mxu0 0
    %398 = vmatpush1.bf16.msra.mxu0 0
    %399 = vmatprep.subr.bf16.mxu0 0
    %400 = vmatpush1.bf16.msra.mxu0 0
    %401 = vmatprep.subr.bf16.mxu0 0
    %402 = vmatpush1.bf16.msra.mxu0 0
    %403 = vmatprep.subr.bf16.mxu0 0
    %404 = vmatpush1.bf16.msra.mxu0 0
    %405 = vmatprep.mubr.bf16.mxu0 0
    %406 = vmatmul.mubr.bf16.gmra.mrb[0].mxu0 %v362
    %v407 = vpop.f32.mrb[0].mxu0
    %v408 = vadd.f32 0.0, %v407
    %v409 = vpop.f32.mrb[0].mxu0
    %v410 = vpop.f32.mrb[0].mxu0
    %v411 = vadd.f32 0.0, %v410
    %v412 = vpop.f32.mrb[0].mxu0
    %413 = vmatprep.mubr.bf16.mxu0 0
    %414 = vmatmul.mubr.bf16.gmra.mrb[0].mxu0 %v365
    %v415 = vpop.f32.mrb[0].mxu0
    %v416 = vadd.f32 0.0, %v415
    %v417 = vpop.f32.mrb[0].mxu0
    %v418 = vpop.f32.mrb[0].mxu0
    %v419 = vadd.f32 0.0, %v418
    %v420 = vpop.f32.mrb[0].mxu0
    %421 = vmatprep.mubr.bf16.mxu0 0
    %422 = vmatmul.mubr.bf16.gmra.mrb[0].mxu0 %v368
    %v423 = vpop.f32.mrb[0].mxu0
    %v424 = vadd.f32 0.0, %v423
    %v425 = vpop.f32.mrb[0].mxu0
    %v426 = vpop.f32.mrb[0].mxu0
    %v427 = vadd.f32 0.0, %v426
    %v428 = vpop.f32.mrb[0].mxu0
    %429 = vdwg.mxu0
    %v430 = vadd.f32 %v335, %v408
    %v431 = vadd.f32 %v336, %v411
    %v432 = vadd.f32 %v337, %v416
    %v433 = vadd.f32 %v338, %v419
    %v434 = vadd.f32 %v339, %v424
    %v435 = vadd.f32 %v340, %v427
    %436 = vst [vmem:[#allocation2] sm:$0xff] %v430
    %437 = vst [vmem:[#allocation2 + $0x8] sm:$0xff] %v431
    %438 = vst [vmem:[#allocation2 + $0x10] sm:$0xff] %v432
    %439 = vst [vmem:[#allocation2 + $0x18] sm:$0xff] %v433
    %440 = vst [vmem:[#allocation2 + $0x20] sm:$0xff] %v434
    %441 = vst [vmem:[#allocation2 + $0x28] sm:$0xff] %v435
    %v442 = vld [vmem:[#allocation2] sm:$0xff]
    %v443 = vld [vmem:[#allocation2 + $0x8] sm:$0xff]
    %v444 = vld [vmem:[#allocation2 + $0x10] sm:$0xff]
    %v445 = vld [vmem:[#allocation2 + $0x18] sm:$0xff]
    %v446 = vld [vmem:[#allocation2 + $0x20] sm:$0xff]
    %v447 = vld [vmem:[#allocation2 + $0x28] sm:$0xff]
    %s448 = scalar_lea.vmem %s1, 16
    %v449 = vld [vmem:[%s448] sm:$0xf]
    %v450 = vpack.c.b16 %v33, %v32
    %v451 = vpack.c.b16 %v35, %v34
    %v452 = vpack.c.b16 %v129, %v36
    %v454 = vsel %vm40, %v450, 0
    %v457 = vsel %vm40, %v451, 0
    %v460 = vsel %vm40, %v452, 0
    %v463 = vand.u32 %v449, %v53
    %465 = vmatprep.subr.bf16.mxu0 0
    %466 = vmatpush1.bf16.msra.mxu0 %v463
    %467 = vmatprep.subr.bf16.mxu0 0
    %468 = vmatpush1.bf16.msra.mxu0 0
    %469 = vmatprep.subr.bf16.mxu0 0
    %470 = vmatpush1.bf16.msra.mxu0 0
    %471 = vmatprep.subr.bf16.mxu0 0
    %472 = vmatpush1.bf16.msra.mxu0 0
    %473 = vmatprep.subr.bf16.mxu0 0
    %474 = vmatpush1.bf16.msra.mxu0 0
    %475 = vmatprep.subr.bf16.mxu0 0
    %476 = vmatpush1.bf16.msra.mxu0 0
    %477 = vmatprep.subr.bf16.mxu0 0
    %478 = vmatpush1.bf16.msra.mxu0 0
    %479 = vmatprep.subr.bf16.mxu0 0
    %480 = vmatpush1.bf16.msra.mxu0 0
    %481 = vmatprep.subr.bf16.mxu0 0
    %482 = vmatpush1.bf16.msra.mxu0 0
    %483 = vmatprep.subr.bf16.mxu0 0
    %484 = vmatpush1.bf16.msra.mxu0 0
    %485 = vmatprep.subr.bf16.mxu0 0
    %486 = vmatpush1.bf16.msra.mxu0 0
    %487 = vmatprep.subr.bf16.mxu0 0
    %488 = vmatpush1.bf16.msra.mxu0 0
    %489 = vmatprep.subr.bf16.mxu0 0
    %490 = vmatpush1.bf16.msra.mxu0 0
    %491 = vmatprep.subr.bf16.mxu0 0
    %492 = vmatpush1.bf16.msra.mxu0 0
    %493 = vmatprep.subr.bf16.mxu0 0
    %494 = vmatpush1.bf16.msra.mxu0 0
    %495 = vmatprep.subr.bf16.mxu0 0
    %496 = vmatpush1.bf16.msra.mxu0 0
    %497 = vmatprep.mubr.bf16.mxu0 0
    %498 = vmatmul.mubr.bf16.gmra.mrb[0].mxu0 %v454
    %v499 = vpop.f32.mrb[0].mxu0
    %v500 = vadd.f32 0.0, %v499
    %v501 = vpop.f32.mrb[0].mxu0
    %v502 = vpop.f32.mrb[0].mxu0
    %v503 = vadd.f32 0.0, %v502
    %v504 = vpop.f32.mrb[0].mxu0
    %505 = vmatprep.mubr.bf16.mxu0 0
    %506 = vmatmul.mubr.bf16.gmra.mrb[0].mxu0 %v457
    %v507 = vpop.f32.mrb[0].mxu0
    %v508 = vadd.f32 0.0, %v507
    %v509 = vpop.f32.mrb[0].mxu0
    %v510 = vpop.f32.mrb[0].mxu0
    %v511 = vadd.f32 0.0, %v510
    %v512 = vpop.f32.mrb[0].mxu0
    %513 = vmatprep.mubr.bf16.mxu0 0
    %514 = vmatmul.mubr.bf16.gmra.mrb[0].mxu0 %v460
    %v515 = vpop.f32.mrb[0].mxu0
    %v516 = vadd.f32 0.0, %v515
    %v517 = vpop.f32.mrb[0].mxu0
    %v518 = vpop.f32.mrb[0].mxu0
    %v519 = vadd.f32 0.0, %v518
    %v520 = vpop.f32.mrb[0].mxu0
    %521 = vdwg.mxu0
    %v522 = vadd.f32 %v442, %v500
    %v523 = vadd.f32 %v443, %v503
    %v524 = vadd.f32 %v444, %v508
    %v525 = vadd.f32 %v445, %v511
    %v526 = vadd.f32 %v446, %v516
    %v527 = vadd.f32 %v447, %v519
    %528 = vst [vmem:[#allocation2] sm:$0xff] %v522
    %529 = vst [vmem:[#allocation2 + $0x8] sm:$0xff] %v523
    %530 = vst [vmem:[#allocation2 + $0x10] sm:$0xff] %v524
    %531 = vst [vmem:[#allocation2 + $0x18] sm:$0xff] %v525
    %532 = vst [vmem:[#allocation2 + $0x20] sm:$0xff] %v526
    %533 = vst [vmem:[#allocation2 + $0x28] sm:$0xff] %v527
    %v534 = vld [vmem:[#allocation2] sm:$0xff]
    %v535 = vld [vmem:[#allocation2 + $0x8] sm:$0xff]
    %v536 = vld [vmem:[#allocation2 + $0x10] sm:$0xff]
    %v537 = vld [vmem:[#allocation2 + $0x18] sm:$0xff]
    %v538 = vld [vmem:[#allocation2 + $0x20] sm:$0xff]
    %v539 = vld [vmem:[#allocation2 + $0x28] sm:$0xff]
    %s540 = scalar_lea.vmem %s1, 20
    %v541 = vld [vmem:[%s540] sm:$0xf]
    %v543 = vunpack.c.l.b16 %v23
    %v544 = vpack.c.b16 %v543, %v543
    %v545 = vshrl.u32 %v450, 16
    %v547 = vshll.u32 %v450, 16
    %v549 = vrot.slane %v547, 1
    %v550 = vor.u32 %v545, %v549
    %v551 = vshll.u32 %v451, 16
    %v553 = vrot.slane %v551, 1
    %v554 = vsel %vm131, %v550, %v553
    %v555 = vshrl.u32 %v451, 16
    %v557 = vor.u32 %v555, %v553
    %v558 = vshll.u32 %v452, 16
    %v560 = vrot.slane %v558, 1
    %v561 = vsel %vm131, %v557, %v560
    %v562 = vshrl.u32 %v452, 16
    %v564 = vor.u32 %v562, %v560
    %v566 = vshll.u32 %v544, 16
    %v568 = vrot.slane %v566, 1
    %v569 = vsel %vm131, %v564, %v568
    %v571 = vsel %vm40, %v554, 0
    %v574 = vsel %vm40, %v561, 0
    %v577 = vsel %vm40, %v569, 0
    %v580 = vand.u32 %v541, %v53
    %582 = vmatprep.subr.bf16.mxu0 0
    %583 = vmatpush1.bf16.msra.mxu0 %v580
    %584 = vmatprep.subr.bf16.mxu0 0
    %585 = vmatpush1.bf16.msra.mxu0 0
    %586 = vmatprep.subr.bf16.mxu0 0
    %587 = vmatpush1.bf16.msra.mxu0 0
    %588 = vmatprep.subr.bf16.mxu0 0
    %589 = vmatpush1.bf16.msra.mxu0 0
    %590 = vmatprep.subr.bf16.mxu0 0
    %591 = vmatpush1.bf16.msra.mxu0 0
    %592 = vmatprep.subr.bf16.mxu0 0
    %593 = vmatpush1.bf16.msra.mxu0 0
    %594 = vmatprep.subr.bf16.mxu0 0
    %595 = vmatpush1.bf16.msra.mxu0 0
    %596 = vmatprep.subr.bf16.mxu0 0
    %597 = vmatpush1.bf16.msra.mxu0 0
    %598 = vmatprep.subr.bf16.mxu0 0
    %599 = vmatpush1.bf16.msra.mxu0 0
    %600 = vmatprep.subr.bf16.mxu0 0
    %601 = vmatpush1.bf16.msra.mxu0 0
    %602 = vmatprep.subr.bf16.mxu0 0
    %603 = vmatpush1.bf16.msra.mxu0 0
    %604 = vmatprep.subr.bf16.mxu0 0
    %605 = vmatpush1.bf16.msra.mxu0 0
    %606 = vmatprep.subr.bf16.mxu0 0
    %607 = vmatpush1.bf16.msra.mxu0 0
    %608 = vmatprep.subr.bf16.mxu0 0
    %609 = vmatpush1.bf16.msra.mxu0 0
    %610 = vmatprep.subr.bf16.mxu0 0
    %611 = vmatpush1.bf16.msra.mxu0 0
    %612 = vmatprep.subr.bf16.mxu0 0
    %613 = vmatpush1.bf16.msra.mxu0 0
    %614 = vmatprep.mubr.bf16.mxu0 0
    %615 = vmatmul.mubr.bf16.gmra.mrb[0].mxu0 %v571
    %v616 = vpop.f32.mrb[0].mxu0
    %v617 = vadd.f32 0.0, %v616
    %v618 = vpop.f32.mrb[0].mxu0
    %v619 = vpop.f32.mrb[0].mxu0
    %v620 = vadd.f32 0.0, %v619
    %v621 = vpop.f32.mrb[0].mxu0
    %622 = vmatprep.mubr.bf16.mxu0 0
    %623 = vmatmul.mubr.bf16.gmra.mrb[0].mxu0 %v574
    %v624 = vpop.f32.mrb[0].mxu0
    %v625 = vadd.f32 0.0, %v624
    %v626 = vpop.f32.mrb[0].mxu0
    %v627 = vpop.f32.mrb[0].mxu0
    %v628 = vadd.f32 0.0, %v627
    %v629 = vpop.f32.mrb[0].mxu0
    %630 = vmatprep.mubr.bf16.mxu0 0
    %631 = vmatmul.mubr.bf16.gmra.mrb[0].mxu0 %v577
    %v632 = vpop.f32.mrb[0].mxu0
    %v633 = vadd.f32 0.0, %v632
    %v634 = vpop.f32.mrb[0].mxu0
    %v635 = vpop.f32.mrb[0].mxu0
    %v636 = vadd.f32 0.0, %v635
    %v637 = vpop.f32.mrb[0].mxu0
    %638 = vdwg.mxu0
    %v639 = vadd.f32 %v534, %v617
    %v640 = vadd.f32 %v535, %v620
    %v641 = vadd.f32 %v536, %v625
    %v642 = vadd.f32 %v537, %v628
    %v643 = vadd.f32 %v538, %v633
    %v644 = vadd.f32 %v539, %v636
    %645 = vst [vmem:[#allocation2] sm:$0xff] %v639
    %646 = vst [vmem:[#allocation2 + $0x8] sm:$0xff] %v640
    %647 = vst [vmem:[#allocation2 + $0x10] sm:$0xff] %v641
    %648 = vst [vmem:[#allocation2 + $0x18] sm:$0xff] %v642
    %649 = vst [vmem:[#allocation2 + $0x20] sm:$0xff] %v643
    %650 = vst [vmem:[#allocation2 + $0x28] sm:$0xff] %v644
    %v651 = vld [vmem:[#allocation2] sm:$0xff]
    %v652 = vld [vmem:[#allocation2 + $0x8] sm:$0xff]
    %v653 = vld [vmem:[#allocation2 + $0x10] sm:$0xff]
    %v654 = vld [vmem:[#allocation2 + $0x18] sm:$0xff]
    %v655 = vld [vmem:[#allocation2 + $0x20] sm:$0xff]
    %v656 = vld [vmem:[#allocation2 + $0x28] sm:$0xff]
    %s657 = scalar_lea.vmem %s1, 24
    %v658 = vld [vmem:[%s657] sm:$0xf]
    %vm659 = vcmask 1044480
    %v660 = vrot.slane %v450, 3
    %v661 = vrot.slane %v451, 3
    %v662 = vsel %vm659, %v660, %v661
    %v663 = vrot.slane %v452, 3
    %v664 = vsel %vm659, %v661, %v663
    %v665 = vrot.slane %v544, 3
    %v666 = vsel %vm659, %v663, %v665
    %v668 = vsel %vm40, %v662, 0
    %v671 = vsel %vm40, %v664, 0
    %v674 = vsel %vm40, %v666, 0
    %v677 = vand.u32 %v658, %v53
    %679 = vmatprep.subr.bf16.mxu0 0
    %680 = vmatpush1.bf16.msra.mxu0 %v677
    %681 = vmatprep.subr.bf16.mxu0 0
    %682 = vmatpush1.bf16.msra.mxu0 0
    %683 = vmatprep.subr.bf16.mxu0 0
    %684 = vmatpush1.bf16.msra.mxu0 0
    %685 = vmatprep.subr.bf16.mxu0 0
    %686 = vmatpush1.bf16.msra.mxu0 0
    %687 = vmatprep.subr.bf16.mxu0 0
    %688 = vmatpush1.bf16.msra.mxu0 0
    %689 = vmatprep.subr.bf16.mxu0 0
    %690 = vmatpush1.bf16.msra.mxu0 0
    %691 = vmatprep.subr.bf16.mxu0 0
    %692 = vmatpush1.bf16.msra.mxu0 0
    %693 = vmatprep.subr.bf16.mxu0 0
    %694 = vmatpush1.bf16.msra.mxu0 0
    %695 = vmatprep.subr.bf16.mxu0 0
    %696 = vmatpush1.bf16.msra.mxu0 0
    %697 = vmatprep.subr.bf16.mxu0 0
    %698 = vmatpush1.bf16.msra.mxu0 0
    %699 = vmatprep.subr.bf16.mxu0 0
    %700 = vmatpush1.bf16.msra.mxu0 0
    %701 = vmatprep.subr.bf16.mxu0 0
    %702 = vmatpush1.bf16.msra.mxu0 0
    %703 = vmatprep.subr.bf16.mxu0 0
    %704 = vmatpush1.bf16.msra.mxu0 0
    %705 = vmatprep.subr.bf16.mxu0 0
    %706 = vmatpush1.bf16.msra.mxu0 0
    %707 = vmatprep.subr.bf16.mxu0 0
    %708 = vmatpush1.bf16.msra.mxu0 0
    %709 = vmatprep.subr.bf16.mxu0 0
    %710 = vmatpush1.bf16.msra.mxu0 0
    %711 = vmatprep.mubr.bf16.mxu0 0
    %712 = vmatmul.mubr.bf16.gmra.mrb[0].mxu0 %v668
    %v713 = vpop.f32.mrb[0].mxu0
    %v714 = vadd.f32 0.0, %v713
    %v715 = vpop.f32.mrb[0].mxu0
    %v716 = vpop.f32.mrb[0].mxu0
    %v717 = vadd.f32 0.0, %v716
    %v718 = vpop.f32.mrb[0].mxu0
    %719 = vmatprep.mubr.bf16.mxu0 0
    %720 = vmatmul.mubr.bf16.gmra.mrb[0].mxu0 %v671
    %v721 = vpop.f32.mrb[0].mxu0
    %v722 = vadd.f32 0.0, %v721
    %v723 = vpop.f32.mrb[0].mxu0
    %v724 = vpop.f32.mrb[0].mxu0
    %v725 = vadd.f32 0.0, %v724
    %v726 = vpop.f32.mrb[0].mxu0
    %727 = vmatprep.mubr.bf16.mxu0 0
    %728 = vmatmul.mubr.bf16.gmra.mrb[0].mxu0 %v674
    %v729 = vpop.f32.mrb[0].mxu0
    %v730 = vadd.f32 0.0, %v729
    %v731 = vpop.f32.mrb[0].mxu0
    %v732 = vpop.f32.mrb[0].mxu0
    %v733 = vadd.f32 0.0, %v732
    %v734 = vpop.f32.mrb[0].mxu0
    %735 = vdwg.mxu0
    %v736 = vadd.f32 %v651, %v714
    %v737 = vadd.f32 %v652, %v717
    %v738 = vadd.f32 %v653, %v722
    %v739 = vadd.f32 %v654, %v725
    %v740 = vadd.f32 %v655, %v730
    %v741 = vadd.f32 %v656, %v733
    %742 = vst [vmem:[#allocation2] sm:$0xff] %v736
    %743 = vst [vmem:[#allocation2 + $0x8] sm:$0xff] %v737
    %744 = vst [vmem:[#allocation2 + $0x10] sm:$0xff] %v738
    %745 = vst [vmem:[#allocation2 + $0x18] sm:$0xff] %v739
    %746 = vst [vmem:[#allocation2 + $0x20] sm:$0xff] %v740
    %747 = vst [vmem:[#allocation2 + $0x28] sm:$0xff] %v741
    %v748 = vld [vmem:[#allocation2] sm:$0xff]
    %v749 = vld [vmem:[#allocation2 + $0x8] sm:$0xff]
    %v750 = vld [vmem:[#allocation2 + $0x10] sm:$0xff]
    %v751 = vld [vmem:[#allocation2 + $0x18] sm:$0xff]
    %v752 = vld [vmem:[#allocation2 + $0x20] sm:$0xff]
    %v753 = vld [vmem:[#allocation2 + $0x28] sm:$0xff]
    %s754 = scalar_lea.vmem %s1, 28
    %v755 = vld [vmem:[%s754] sm:$0xf]
    %v756 = vrot.slane %v545, 3
    %v757 = vrot.slane %v547, 4
    %v758 = vor.u32 %v756, %v757
    %v759 = vrot.slane %v555, 3
    %v760 = vrot.slane %v551, 4
    %v761 = vor.u32 %v759, %v760
    %v762 = vsel %vm343, %v758, %v761
    %v763 = vrot.slane %v562, 3
    %v764 = vrot.slane %v558, 4
    %v765 = vor.u32 %v763, %v764
    %v766 = vsel %vm343, %v761, %v765
    %v767 = vshrl.u32 %v544, 16
    %v769 = vrot.slane %v767, 3
    %v770 = vrot.slane %v566, 4
    %v771 = vor.u32 %v769, %v770
    %v772 = vsel %vm343, %v765, %v771
    %v774 = vsel %vm40, %v762, 0
    %v777 = vsel %vm40, %v766, 0
    %v780 = vsel %vm40, %v772, 0
    %v783 = vand.u32 %v755, %v53
    %785 = vmatprep.subr.bf16.mxu0 0
    %786 = vmatpush1.bf16.msra.mxu0 %v783
    %787 = vmatprep.subr.bf16.mxu0 0
    %788 = vmatpush1.bf16.msra.mxu0 0
    %789 = vmatprep.subr.bf16.mxu0 0
    %790 = vmatpush1.bf16.msra.mxu0 0
    %791 = vmatprep.subr.bf16.mxu0 0
    %792 = vmatpush1.bf16.msra.mxu0 0
    %793 = vmatprep.subr.bf16.mxu0 0
    %794 = vmatpush1.bf16.msra.mxu0 0
    %795 = vmatprep.subr.bf16.mxu0 0
    %796 = vmatpush1.bf16.msra.mxu0 0
    %797 = vmatprep.subr.bf16.mxu0 0
    %798 = vmatpush1.bf16.msra.mxu0 0
    %799 = vmatprep.subr.bf16.mxu0 0
    %800 = vmatpush1.bf16.msra.mxu0 0
    %801 = vmatprep.subr.bf16.mxu0 0
    %802 = vmatpush1.bf16.msra.mxu0 0
    %803 = vmatprep.subr.bf16.mxu0 0
    %804 = vmatpush1.bf16.msra.mxu0 0
    %805 = vmatprep.subr.bf16.mxu0 0
    %806 = vmatpush1.bf16.msra.mxu0 0
    %807 = vmatprep.subr.bf16.mxu0 0
    %808 = vmatpush1.bf16.msra.mxu0 0
    %809 = vmatprep.subr.bf16.mxu0 0
    %810 = vmatpush1.bf16.msra.mxu0 0
    %811 = vmatprep.subr.bf16.mxu0 0
    %812 = vmatpush1.bf16.msra.mxu0 0
    %813 = vmatprep.subr.bf16.mxu0 0
    %814 = vmatpush1.bf16.msra.mxu0 0
    %815 = vmatprep.subr.bf16.mxu0 0
    %816 = vmatpush1.bf16.msra.mxu0 0
    %817 = vmatprep.mubr.bf16.mxu0 0
    %818 = vmatmul.mubr.bf16.gmra.mrb[0].mxu0 %v774
    %v819 = vpop.f32.mrb[0].mxu0
    %v820 = vadd.f32 0.0, %v819
    %v821 = vpop.f32.mrb[0].mxu0
    %v822 = vpop.f32.mrb[0].mxu0
    %v823 = vadd.f32 0.0, %v822
    %v824 = vpop.f32.mrb[0].mxu0
    %825 = vmatprep.mubr.bf16.mxu0 0
    %826 = vmatmul.mubr.bf16.gmra.mrb[0].mxu0 %v777
    %v827 = vpop.f32.mrb[0].mxu0
    %v828 = vadd.f32 0.0, %v827
    %v829 = vpop.f32.mrb[0].mxu0
    %v830 = vpop.f32.mrb[0].mxu0
    %v831 = vadd.f32 0.0, %v830
    %v832 = vpop.f32.mrb[0].mxu0
    %833 = vmatprep.mubr.bf16.mxu0 0
    %834 = vmatmul.mubr.bf16.gmra.mrb[0].mxu0 %v780
    %v835 = vpop.f32.mrb[0].mxu0
    %v836 = vadd.f32 0.0, %v835
    %v837 = vpop.f32.mrb[0].mxu0
    %v838 = vpop.f32.mrb[0].mxu0
    %v839 = vadd.f32 0.0, %v838
    %v840 = vpop.f32.mrb[0].mxu0
    %841 = vdwg.mxu0
    %v842 = vadd.f32 %v748, %v820
    %v843 = vadd.f32 %v749, %v823
    %v844 = vadd.f32 %v750, %v828
    %v845 = vadd.f32 %v751, %v831
    %v846 = vadd.f32 %v752, %v836
    %v847 = vadd.f32 %v753, %v839
    %848 = vst [vmem:[#allocation2] sm:$0xff] %v842
    %849 = vst [vmem:[#allocation2 + $0x8] sm:$0xff] %v843
    %850 = vst [vmem:[#allocation2 + $0x10] sm:$0xff] %v844
    %851 = vst [vmem:[#allocation2 + $0x18] sm:$0xff] %v845
    %852 = vst [vmem:[#allocation2 + $0x20] sm:$0xff] %v846
    %853 = vst [vmem:[#allocation2 + $0x28] sm:$0xff] %v847
    %v854 = vld [vmem:[#allocation2] sm:$0xff]
    %v855 = vld [vmem:[#allocation2 + $0x8] sm:$0xff]
    %v856 = vld [vmem:[#allocation2 + $0x10] sm:$0xff]
    %v857 = vld [vmem:[#allocation2 + $0x18] sm:$0xff]
    %v858 = vld [vmem:[#allocation2 + $0x20] sm:$0xff]
    %v859 = vld [vmem:[#allocation2 + $0x28] sm:$0xff]
    %s860 = scalar_lea.vmem %s1, 32
    %v861 = vld [vmem:[%s860] sm:$0xf]
    %v862 = vpack.c.b16 %v543, %v129
    %v864 = vsel %vm40, %v862, 0
    %v867 = vand.u32 %v861, %v53
    %869 = vmatprep.subr.bf16.mxu0 0
    %870 = vmatpush1.bf16.msra.mxu0 %v867
    %871 = vmatprep.subr.bf16.mxu0 0
    %872 = vmatpush1.bf16.msra.mxu0 0
    %873 = vmatprep.subr.bf16.mxu0 0
    %874 = vmatpush1.bf16.msra.mxu0 0
    %875 = vmatprep.subr.bf16.mxu0 0
    %876 = vmatpush1.bf16.msra.mxu0 0
    %877 = vmatprep.subr.bf16.mxu0 0
    %878 = vmatpush1.bf16.msra.mxu0 0
    %879 = vmatprep.subr.bf16.mxu0 0
    %880 = vmatpush1.bf16.msra.mxu0 0
    %881 = vmatprep.subr.bf16.mxu0 0
    %882 = vmatpush1.bf16.msra.mxu0 0
    %883 = vmatprep.subr.bf16.mxu0 0
    %884 = vmatpush1.bf16.msra.mxu0 0
    %885 = vmatprep.subr.bf16.mxu0 0
    %886 = vmatpush1.bf16.msra.mxu0 0
    %887 = vmatprep.subr.bf16.mxu0 0
    %888 = vmatpush1.bf16.msra.mxu0 0
    %889 = vmatprep.subr.bf16.mxu0 0
    %890 = vmatpush1.bf16.msra.mxu0 0
    %891 = vmatprep.subr.bf16.mxu0 0
    %892 = vmatpush1.bf16.msra.mxu0 0
    %893 = vmatprep.subr.bf16.mxu0 0
    %894 = vmatpush1.bf16.msra.mxu0 0
    %895 = vmatprep.subr.bf16.mxu0 0
    %896 = vmatpush1.bf16.msra.mxu0 0
    %897 = vmatprep.subr.bf16.mxu0 0
    %898 = vmatpush1.bf16.msra.mxu0 0
    %899 = vmatprep.subr.bf16.mxu0 0
    %900 = vmatpush1.bf16.msra.mxu0 0
    %901 = vmatprep.mubr.bf16.mxu0 0
    %902 = vmatmul.mubr.bf16.gmra.mrb[0].mxu0 %v45
    %v903 = vpop.f32.mrb[0].mxu0
    %v904 = vadd.f32 0.0, %v903
    %v905 = vpop.f32.mrb[0].mxu0
    %v906 = vpop.f32.mrb[0].mxu0
    %v907 = vadd.f32 0.0, %v906
    %v908 = vpop.f32.mrb[0].mxu0
    %909 = vmatprep.mubr.bf16.mxu0 0
    %910 = vmatmul.mubr.bf16.gmra.mrb[0].mxu0 %v48
    %v911 = vpop.f32.mrb[0].mxu0
    %v912 = vadd.f32 0.0, %v911
    %v913 = vpop.f32.mrb[0].mxu0
    %v914 = vpop.f32.mrb[0].mxu0
    %v915 = vadd.f32 0.0, %v914
    %v916 = vpop.f32.mrb[0].mxu0
    %917 = vmatprep.mubr.bf16.mxu0 0
    %918 = vmatmul.mubr.bf16.gmra.mrb[0].mxu0 %v864
    %v919 = vpop.f32.mrb[0].mxu0
    %v920 = vadd.f32 0.0, %v919
    %v921 = vpop.f32.mrb[0].mxu0
    %v922 = vpop.f32.mrb[0].mxu0
    %v923 = vadd.f32 0.0, %v922
    %v924 = vpop.f32.mrb[0].mxu0
    %925 = vdwg.mxu0
    %v926 = vadd.f32 %v854, %v904
    %v927 = vadd.f32 %v855, %v907
    %v928 = vadd.f32 %v856, %v912
    %v929 = vadd.f32 %v857, %v915
    %v930 = vadd.f32 %v858, %v920
    %v931 = vadd.f32 %v859, %v923
    %932 = vst [vmem:[#allocation2] sm:$0xff] %v926
    %933 = vst [vmem:[#allocation2 + $0x8] sm:$0xff] %v927
    %934 = vst [vmem:[#allocation2 + $0x10] sm:$0xff] %v928
    %935 = vst [vmem:[#allocation2 + $0x18] sm:$0xff] %v929
    %936 = vst [vmem:[#allocation2 + $0x20] sm:$0xff] %v930
    %937 = vst [vmem:[#allocation2 + $0x28] sm:$0xff] %v931
    %s938 = scalar_lea.vmem %s0, 32
    %v939 = vld [vmem:[%s938] sm:$0xf]
    %v940 = vld [vmem:[%s938 + $0x4] sm:$0xf]
    %v941 = vld [vmem:[%s938 + $0x8] sm:$0xf]
    %v942 = vld [vmem:[%s938 + $0xc] sm:$0xf]
    %v943 = vld [vmem:[%s938 + $0x10] sm:$0xf]
    %v944 = vld [vmem:[%s938 + $0x14] sm:$0xf]
    %v945 = vld [vmem:[%s938 + $0x18] sm:$0xf]
    %v946 = vld [vmem:[%s938 + $0x1c] sm:$0xf]
    %v947 = vld [vmem:[%s1] sm:$0xf]
    %v954 = vunpack.c.l.b16 %v939
    %v955 = vunpack.c.l.b16 %v940
    %v956 = vunpack.c.l.b16 %v941
    %v957 = vunpack.c.l.b16 %v942
    %v958 = vunpack.c.l.b16 %v943
    %v959 = vunpack.c.l.b16 %v944
    %v960 = vpack.c.b16 %v955, %v954
    %v961 = vpack.c.b16 %v957, %v956
    %v962 = vpack.c.b16 %v959, %v958
    %v964 = vsel %vm40, %v960, 0
    %v967 = vsel %vm40, %v961, 0
    %v970 = vsel %vm40, %v962, 0
    %v973 = vand.u32 %v947, %v53
    %975 = vmatprep.subr.bf16.mxu0 0
    %976 = vmatpush1.bf16.msra.mxu0 %v973
    %977 = vmatprep.subr.bf16.mxu0 0
    %978 = vmatpush1.bf16.msra.mxu0 0
    %979 = vmatprep.subr.bf16.mxu0 0
    %980 = vmatpush1.bf16.msra.mxu0 0
    %981 = vmatprep.subr.bf16.mxu0 0
    %982 = vmatpush1.bf16.msra.mxu0 0
    %983 = vmatprep.subr.bf16.mxu0 0
    %984 = vmatpush1.bf16.msra.mxu0 0
    %985 = vmatprep.subr.bf16.mxu0 0
    %986 = vmatpush1.bf16.msra.mxu0 0
    %987 = vmatprep.subr.bf16.mxu0 0
    %988 = vmatpush1.bf16.msra.mxu0 0
    %989 = vmatprep.subr.bf16.mxu0 0
    %990 = vmatpush1.bf16.msra.mxu0 0
    %991 = vmatprep.subr.bf16.mxu0 0
    %992 = vmatpush1.bf16.msra.mxu0 0
    %993 = vmatprep.subr.bf16.mxu0 0
    %994 = vmatpush1.bf16.msra.mxu0 0
    %995 = vmatprep.subr.bf16.mxu0 0
    %996 = vmatpush1.bf16.msra.mxu0 0
    %997 = vmatprep.subr.bf16.mxu0 0
    %998 = vmatpush1.bf16.msra.mxu0 0
    %999 = vmatprep.subr.bf16.mxu0 0
    %1000 = vmatpush1.bf16.msra.mxu0 0
    %1001 = vmatprep.subr.bf16.mxu0 0
    %1002 = vmatpush1.bf16.msra.mxu0 0
    %1003 = vmatprep.subr.bf16.mxu0 0
    %1004 = vmatpush1.bf16.msra.mxu0 0
    %1005 = vmatprep.subr.bf16.mxu0 0
    %1006 = vmatpush1.bf16.msra.mxu0 0
    %1007 = vmatprep.mubr.bf16.mxu0 0
    %1008 = vmatmul.mubr.bf16.gmra.mrb[0].mxu0 %v964
    %v1009 = vpop.f32.mrb[0].mxu0
    %v1010 = vadd.f32 0.0, %v1009
    %v1011 = vpop.f32.mrb[0].mxu0
    %v1012 = vpop.f32.mrb[0].mxu0
    %v1013 = vadd.f32 0.0, %v1012
    %v1014 = vpop.f32.mrb[0].mxu0
    %1015 = vmatprep.mubr.bf16.mxu0 0
    %1016 = vmatmul.mubr.bf16.gmra.mrb[0].mxu0 %v967
    %v1017 = vpop.f32.mrb[0].mxu0
    %v1018 = vadd.f32 0.0, %v1017
    %v1019 = vpop.f32.mrb[0].mxu0
    %v1020 = vpop.f32.mrb[0].mxu0
    %v1021 = vadd.f32 0.0, %v1020
    %v1022 = vpop.f32.mrb[0].mxu0
    %1023 = vmatprep.mubr.bf16.mxu0 0
    %1024 = vmatmul.mubr.bf16.gmra.mrb[0].mxu0 %v970
    %v1025 = vpop.f32.mrb[0].mxu0
    %v1026 = vadd.f32 0.0, %v1025
    %v1027 = vpop.f32.mrb[0].mxu0
    %v1028 = vpop.f32.mrb[0].mxu0
    %v1029 = vadd.f32 0.0, %v1028
    %v1030 = vpop.f32.mrb[0].mxu0
    %1031 = vdwg.mxu0
    %s1032 = scalar_lea.vmem [#allocation2], 48
    %1033 = vst [vmem:[%s1032] sm:$0xff] %v1010
    %1034 = vst [vmem:[%s1032 + $0x8] sm:$0xff] %v1013
    %1035 = vst [vmem:[%s1032 + $0x10] sm:$0xff] %v1018
    %1036 = vst [vmem:[%s1032 + $0x18] sm:$0xff] %v1021
    %1037 = vst [vmem:[%s1032 + $0x20] sm:$0xff] %v1026
    %1038 = vst [vmem:[%s1032 + $0x28] sm:$0xff] %v1029
    %v1039 = vld [vmem:[%s1032] sm:$0xff]
    %v1040 = vld [vmem:[%s1032 + $0x8] sm:$0xff]
    %v1041 = vld [vmem:[%s1032 + $0x10] sm:$0xff]
    %v1042 = vld [vmem:[%s1032 + $0x18] sm:$0xff]
    %v1043 = vld [vmem:[%s1032 + $0x20] sm:$0xff]
    %v1044 = vld [vmem:[%s1032 + $0x28] sm:$0xff]
    %v1045 = vld [vmem:[%s126] sm:$0xf]
    %v1047 = vunpack.c.l.b16 %v945
    %v1048 = vpack.c.b16 %v1047, %v1047
    %v1049 = vshrl.u32 %v960, 16
    %v1051 = vshll.u32 %v960, 16
    %v1053 = vrot.slane %v1051, 1
    %v1054 = vor.u32 %v1049, %v1053
    %v1055 = vshll.u32 %v961, 16
    %v1057 = vrot.slane %v1055, 1
    %v1058 = vsel %vm131, %v1054, %v1057
    %v1059 = vshrl.u32 %v961, 16
    %v1061 = vor.u32 %v1059, %v1057
    %v1062 = vshll.u32 %v962, 16
    %v1064 = vrot.slane %v1062, 1
    %v1065 = vsel %vm131, %v1061, %v1064
    %v1066 = vshrl.u32 %v962, 16
    %v1068 = vor.u32 %v1066, %v1064
    %v1070 = vshll.u32 %v1048, 16
    %v1072 = vrot.slane %v1070, 1
    %v1073 = vsel %vm131, %v1068, %v1072
    %v1075 = vsel %vm40, %v1058, 0
    %v1078 = vsel %vm40, %v1065, 0
    %v1081 = vsel %vm40, %v1073, 0
    %v1084 = vand.u32 %v1045, %v53
    %1086 = vmatprep.subr.bf16.mxu0 0
    %1087 = vmatpush1.bf16.msra.mxu0 %v1084
    %1088 = vmatprep.subr.bf16.mxu0 0
    %1089 = vmatpush1.bf16.msra.mxu0 0
    %1090 = vmatprep.subr.bf16.mxu0 0
    %1091 = vmatpush1.bf16.msra.mxu0 0
    %1092 = vmatprep.subr.bf16.mxu0 0
    %1093 = vmatpush1.bf16.msra.mxu0 0
    %1094 = vmatprep.subr.bf16.mxu0 0
    %1095 = vmatpush1.bf16.msra.mxu0 0
    %1096 = vmatprep.subr.bf16.mxu0 0
    %1097 = vmatpush1.bf16.msra.mxu0 0
    %1098 = vmatprep.subr.bf16.mxu0 0
    %1099 = vmatpush1.bf16.msra.mxu0 0
    %1100 = vmatprep.subr.bf16.mxu0 0
    %1101 = vmatpush1.bf16.msra.mxu0 0
    %1102 = vmatprep.subr.bf16.mxu0 0
    %1103 = vmatpush1.bf16.msra.mxu0 0
    %1104 = vmatprep.subr.bf16.mxu0 0
    %1105 = vmatpush1.bf16.msra.mxu0 0
    %1106 = vmatprep.subr.bf16.mxu0 0
    %1107 = vmatpush1.bf16.msra.mxu0 0
    %1108 = vmatprep.subr.bf16.mxu0 0
    %1109 = vmatpush1.bf16.msra.mxu0 0
    %1110 = vmatprep.subr.bf16.mxu0 0
    %1111 = vmatpush1.bf16.msra.mxu0 0
    %1112 = vmatprep.subr.bf16.mxu0 0
    %1113 = vmatpush1.bf16.msra.mxu0 0
    %1114 = vmatprep.subr.bf16.mxu0 0
    %1115 = vmatpush1.bf16.msra.mxu0 0
    %1116 = vmatprep.subr.bf16.mxu0 0
    %1117 = vmatpush1.bf16.msra.mxu0 0
    %1118 = vmatprep.mubr.bf16.mxu0 0
    %1119 = vmatmul.mubr.bf16.gmra.mrb[0].mxu0 %v1075
    %v1120 = vpop.f32.mrb[0].mxu0
    %v1121 = vadd.f32 0.0, %v1120
    %v1122 = vpop.f32.mrb[0].mxu0
    %v1123 = vpop.f32.mrb[0].mxu0
    %v1124 = vadd.f32 0.0, %v1123
    %v1125 = vpop.f32.mrb[0].mxu0
    %1126 = vmatprep.mubr.bf16.mxu0 0
    %1127 = vmatmul.mubr.bf16.gmra.mrb[0].mxu0 %v1078
    %v1128 = vpop.f32.mrb[0].mxu0
    %v1129 = vadd.f32 0.0, %v1128
    %v1130 = vpop.f32.mrb[0].mxu0
    %v1131 = vpop.f32.mrb[0].mxu0
    %v1132 = vadd.f32 0.0, %v1131
    %v1133 = vpop.f32.mrb[0].mxu0
    %1134 = vmatprep.mubr.bf16.mxu0 0
    %1135 = vmatmul.mubr.bf16.gmra.mrb[0].mxu0 %v1081
    %v1136 = vpop.f32.mrb[0].mxu0
    %v1137 = vadd.f32 0.0, %v1136
    %v1138 = vpop.f32.mrb[0].mxu0
    %v1139 = vpop.f32.mrb[0].mxu0
    %v1140 = vadd.f32 0.0, %v1139
    %v1141 = vpop.f32.mrb[0].mxu0
    %1142 = vdwg.mxu0
    %v1143 = vadd.f32 %v1039, %v1121
    %v1144 = vadd.f32 %v1040, %v1124
    %v1145 = vadd.f32 %v1041, %v1129
    %v1146 = vadd.f32 %v1042, %v1132
    %v1147 = vadd.f32 %v1043, %v1137
    %v1148 = vadd.f32 %v1044, %v1140
    %1149 = vst [vmem:[%s1032] sm:$0xff] %v1143
    %1150 = vst [vmem:[%s1032 + $0x8] sm:$0xff] %v1144
    %1151 = vst [vmem:[%s1032 + $0x10] sm:$0xff] %v1145
    %1152 = vst [vmem:[%s1032 + $0x18] sm:$0xff] %v1146
    %1153 = vst [vmem:[%s1032 + $0x20] sm:$0xff] %v1147
    %1154 = vst [vmem:[%s1032 + $0x28] sm:$0xff] %v1148
    %v1155 = vld [vmem:[%s1032] sm:$0xff]
    %v1156 = vld [vmem:[%s1032 + $0x8] sm:$0xff]
    %v1157 = vld [vmem:[%s1032 + $0x10] sm:$0xff]
    %v1158 = vld [vmem:[%s1032 + $0x18] sm:$0xff]
    %v1159 = vld [vmem:[%s1032 + $0x20] sm:$0xff]
    %v1160 = vld [vmem:[%s1032 + $0x28] sm:$0xff]
    %v1161 = vld [vmem:[%s244] sm:$0xf]
    %v1162 = vrot.slane %v960, 1
    %v1163 = vrot.slane %v961, 1
    %v1164 = vsel %vm246, %v1162, %v1163
    %v1165 = vrot.slane %v962, 1
    %v1166 = vsel %vm246, %v1163, %v1165
    %v1167 = vrot.slane %v1048, 1
    %v1168 = vsel %vm246, %v1165, %v1167
    %v1170 = vsel %vm40, %v1164, 0
    %v1173 = vsel %vm40, %v1166, 0
    %v1176 = vsel %vm40, %v1168, 0
    %v1179 = vand.u32 %v1161, %v53
    %1181 = vmatprep.subr.bf16.mxu0 0
    %1182 = vmatpush1.bf16.msra.mxu0 %v1179
    %1183 = vmatprep.subr.bf16.mxu0 0
    %1184 = vmatpush1.bf16.msra.mxu0 0
    %1185 = vmatprep.subr.bf16.mxu0 0
    %1186 = vmatpush1.bf16.msra.mxu0 0
    %1187 = vmatprep.subr.bf16.mxu0 0
    %1188 = vmatpush1.bf16.msra.mxu0 0
    %1189 = vmatprep.subr.bf16.mxu0 0
    %1190 = vmatpush1.bf16.msra.mxu0 0
    %1191 = vmatprep.subr.bf16.mxu0 0
    %1192 = vmatpush1.bf16.msra.mxu0 0
    %1193 = vmatprep.subr.bf16.mxu0 0
    %1194 = vmatpush1.bf16.msra.mxu0 0
    %1195 = vmatprep.subr.bf16.mxu0 0
    %1196 = vmatpush1.bf16.msra.mxu0 0
    %1197 = vmatprep.subr.bf16.mxu0 0
    %1198 = vmatpush1.bf16.msra.mxu0 0
    %1199 = vmatprep.subr.bf16.mxu0 0
    %1200 = vmatpush1.bf16.msra.mxu0 0
    %1201 = vmatprep.subr.bf16.mxu0 0
    %1202 = vmatpush1.bf16.msra.mxu0 0
    %1203 = vmatprep.subr.bf16.mxu0 0
    %1204 = vmatpush1.bf16.msra.mxu0 0
    %1205 = vmatprep.subr.bf16.mxu0 0
    %1206 = vmatpush1.bf16.msra.mxu0 0
    %1207 = vmatprep.subr.bf16.mxu0 0
    %1208 = vmatpush1.bf16.msra.mxu0 0
    %1209 = vmatprep.subr.bf16.mxu0 0
    %1210 = vmatpush1.bf16.msra.mxu0 0
    %1211 = vmatprep.subr.bf16.mxu0 0
    %1212 = vmatpush1.bf16.msra.mxu0 0
    %1213 = vmatprep.mubr.bf16.mxu0 0
    %1214 = vmatmul.mubr.bf16.gmra.mrb[0].mxu0 %v1170
    %v1215 = vpop.f32.mrb[0].mxu0
    %v1216 = vadd.f32 0.0, %v1215
    %v1217 = vpop.f32.mrb[0].mxu0
    %v1218 = vpop.f32.mrb[0].mxu0
    %v1219 = vadd.f32 0.0, %v1218
    %v1220 = vpop.f32.mrb[0].mxu0
    %1221 = vmatprep.mubr.bf16.mxu0 0
    %1222 = vmatmul.mubr.bf16.gmra.mrb[0].mxu0 %v1173
    %v1223 = vpop.f32.mrb[0].mxu0
    %v1224 = vadd.f32 0.0, %v1223
    %v1225 = vpop.f32.mrb[0].mxu0
    %v1226 = vpop.f32.mrb[0].mxu0
    %v1227 = vadd.f32 0.0, %v1226
    %v1228 = vpop.f32.mrb[0].mxu0
    %1229 = vmatprep.mubr.bf16.mxu0 0
    %1230 = vmatmul.mubr.bf16.gmra.mrb[0].mxu0 %v1176
    %v1231 = vpop.f32.mrb[0].mxu0
    %v1232 = vadd.f32 0.0, %v1231
    %v1233 = vpop.f32.mrb[0].mxu0
    %v1234 = vpop.f32.mrb[0].mxu0
    %v1235 = vadd.f32 0.0, %v1234
    %v1236 = vpop.f32.mrb[0].mxu0
    %1237 = vdwg.mxu0
    %v1238 = vadd.f32 %v1155, %v1216
    %v1239 = vadd.f32 %v1156, %v1219
    %v1240 = vadd.f32 %v1157, %v1224
    %v1241 = vadd.f32 %v1158, %v1227
    %v1242 = vadd.f32 %v1159, %v1232
    %v1243 = vadd.f32 %v1160, %v1235
    %1244 = vst [vmem:[%s1032] sm:$0xff] %v1238
    %1245 = vst [vmem:[%s1032 + $0x8] sm:$0xff] %v1239
    %1246 = vst [vmem:[%s1032 + $0x10] sm:$0xff] %v1240
    %1247 = vst [vmem:[%s1032 + $0x18] sm:$0xff] %v1241
    %1248 = vst [vmem:[%s1032 + $0x20] sm:$0xff] %v1242
    %1249 = vst [vmem:[%s1032 + $0x28] sm:$0xff] %v1243
    %v1250 = vld [vmem:[%s1032] sm:$0xff]
    %v1251 = vld [vmem:[%s1032 + $0x8] sm:$0xff]
    %v1252 = vld [vmem:[%s1032 + $0x10] sm:$0xff]
    %v1253 = vld [vmem:[%s1032 + $0x18] sm:$0xff]
    %v1254 = vld [vmem:[%s1032 + $0x20] sm:$0xff]
    %v1255 = vld [vmem:[%s1032 + $0x28] sm:$0xff]
    %v1256 = vld [vmem:[%s341] sm:$0xf]
    %v1257 = vrot.slane %v1049, 3
    %v1258 = vrot.slane %v1051, 4
    %v1259 = vor.u32 %v1257, %v1258
    %v1260 = vrot.slane %v1059, 3
    %v1261 = vrot.slane %v1055, 4
    %v1262 = vor.u32 %v1260, %v1261
    %v1263 = vsel %vm343, %v1259, %v1262
    %v1264 = vrot.slane %v1066, 3
    %v1265 = vrot.slane %v1062, 4
    %v1266 = vor.u32 %v1264, %v1265
    %v1267 = vsel %vm343, %v1262, %v1266
    %v1268 = vshrl.u32 %v1048, 16
    %v1270 = vrot.slane %v1268, 3
    %v1271 = vrot.slane %v1070, 4
    %v1272 = vor.u32 %v1270, %v1271
    %v1273 = vsel %vm343, %v1266, %v1272
    %v1275 = vsel %vm40, %v1263, 0
    %v1278 = vsel %vm40, %v1267, 0
    %v1281 = vsel %vm40, %v1273, 0
    %v1284 = vand.u32 %v1256, %v53
    %1286 = vmatprep.subr.bf16.mxu0 0
    %1287 = vmatpush1.bf16.msra.mxu0 %v1284
    %1288 = vmatprep.subr.bf16.mxu0 0
    %1289 = vmatpush1.bf16.msra.mxu0 0
    %1290 = vmatprep.subr.bf16.mxu0 0
    %1291 = vmatpush1.bf16.msra.mxu0 0
    %1292 = vmatprep.subr.bf16.mxu0 0
    %1293 = vmatpush1.bf16.msra.mxu0 0
    %1294 = vmatprep.subr.bf16.mxu0 0
    %1295 = vmatpush1.bf16.msra.mxu0 0
    %1296 = vmatprep.subr.bf16.mxu0 0
    %1297 = vmatpush1.bf16.msra.mxu0 0
    %1298 = vmatprep.subr.bf16.mxu0 0
    %1299 = vmatpush1.bf16.msra.mxu0 0
    %1300 = vmatprep.subr.bf16.mxu0 0
    %1301 = vmatpush1.bf16.msra.mxu0 0
    %1302 = vmatprep.subr.bf16.mxu0 0
    %1303 = vmatpush1.bf16.msra.mxu0 0
    %1304 = vmatprep.subr.bf16.mxu0 0
    %1305 = vmatpush1.bf16.msra.mxu0 0
    %1306 = vmatprep.subr.bf16.mxu0 0
    %1307 = vmatpush1.bf16.msra.mxu0 0
    %1308 = vmatprep.subr.bf16.mxu0 0
    %1309 = vmatpush1.bf16.msra.mxu0 0
    %1310 = vmatprep.subr.bf16.mxu0 0
    %1311 = vmatpush1.bf16.msra.mxu0 0
    %1312 = vmatprep.subr.bf16.mxu0 0
    %1313 = vmatpush1.bf16.msra.mxu0 0
    %1314 = vmatprep.subr.bf16.mxu0 0
    %1315 = vmatpush1.bf16.msra.mxu0 0
    %1316 = vmatprep.subr.bf16.mxu0 0
    %1317 = vmatpush1.bf16.msra.mxu0 0
    %1318 = vmatprep.mubr.bf16.mxu0 0
    %1319 = vmatmul.mubr.bf16.gmra.mrb[0].mxu0 %v1275
    %v1320 = vpop.f32.mrb[0].mxu0
    %v1321 = vadd.f32 0.0, %v1320
    %v1322 = vpop.f32.mrb[0].mxu0
    %v1323 = vpop.f32.mrb[0].mxu0
    %v1324 = vadd.f32 0.0, %v1323
    %v1325 = vpop.f32.mrb[0].mxu0
    %1326 = vmatprep.mubr.bf16.mxu0 0
    %1327 = vmatmul.mubr.bf16.gmra.mrb[0].mxu0 %v1278
    %v1328 = vpop.f32.mrb[0].mxu0
    %v1329 = vadd.f32 0.0, %v1328
    %v1330 = vpop.f32.mrb[0].mxu0
    %v1331 = vpop.f32.mrb[0].mxu0
    %v1332 = vadd.f32 0.0, %v1331
    %v1333 = vpop.f32.mrb[0].mxu0
    %1334 = vmatprep.mubr.bf16.mxu0 0
    %1335 = vmatmul.mubr.bf16.gmra.mrb[0].mxu0 %v1281
    %v1336 = vpop.f32.mrb[0].mxu0
    %v1337 = vadd.f32 0.0, %v1336
    %v1338 = vpop.f32.mrb[0].mxu0
    %v1339 = vpop.f32.mrb[0].mxu0
    %v1340 = vadd.f32 0.0, %v1339
    %v1341 = vpop.f32.mrb[0].mxu0
    %1342 = vdwg.mxu0
    %v1343 = vadd.f32 %v1250, %v1321
    %v1344 = vadd.f32 %v1251, %v1324
    %v1345 = vadd.f32 %v1252, %v1329
    %v1346 = vadd.f32 %v1253, %v1332
    %v1347 = vadd.f32 %v1254, %v1337
    %v1348 = vadd.f32 %v1255, %v1340
    %1349 = vst [vmem:[%s1032] sm:$0xff] %v1343
    %1350 = vst [vmem:[%s1032 + $0x8] sm:$0xff] %v1344
    %1351 = vst [vmem:[%s1032 + $0x10] sm:$0xff] %v1345
    %1352 = vst [vmem:[%s1032 + $0x18] sm:$0xff] %v1346
    %1353 = vst [vmem:[%s1032 + $0x20] sm:$0xff] %v1347
    %1354 = vst [vmem:[%s1032 + $0x28] sm:$0xff] %v1348
    %v1355 = vld [vmem:[%s1032] sm:$0xff]
    %v1356 = vld [vmem:[%s1032 + $0x8] sm:$0xff]
    %v1357 = vld [vmem:[%s1032 + $0x10] sm:$0xff]
    %v1358 = vld [vmem:[%s1032 + $0x18] sm:$0xff]
    %v1359 = vld [vmem:[%s1032 + $0x20] sm:$0xff]
    %v1360 = vld [vmem:[%s1032 + $0x28] sm:$0xff]
    %v1361 = vld [vmem:[%s448] sm:$0xf]
    %v1362 = vpack.c.b16 %v956, %v955
    %v1363 = vpack.c.b16 %v958, %v957
    %v1364 = vpack.c.b16 %v1047, %v959
    %v1366 = vsel %vm40, %v1362, 0
    %v1369 = vsel %vm40, %v1363, 0
    %v1372 = vsel %vm40, %v1364, 0
    %v1375 = vand.u32 %v1361, %v53
    %1377 = vmatprep.subr.bf16.mxu0 0
    %1378 = vmatpush1.bf16.msra.mxu0 %v1375
    %1379 = vmatprep.subr.bf16.mxu0 0
    %1380 = vmatpush1.bf16.msra.mxu0 0
    %1381 = vmatprep.subr.bf16.mxu0 0
    %1382 = vmatpush1.bf16.msra.mxu0 0
    %1383 = vmatprep.subr.bf16.mxu0 0
    %1384 = vmatpush1.bf16.msra.mxu0 0
    %1385 = vmatprep.subr.bf16.mxu0 0
    %1386 = vmatpush1.bf16.msra.mxu0 0
    %1387 = vmatprep.subr.bf16.mxu0 0
    %1388 = vmatpush1.bf16.msra.mxu0 0
    %1389 = vmatprep.subr.bf16.mxu0 0
    %1390 = vmatpush1.bf16.msra.mxu0 0
    %1391 = vmatprep.subr.bf16.mxu0 0
    %1392 = vmatpush1.bf16.msra.mxu0 0
    %1393 = vmatprep.subr.bf16.mxu0 0
    %1394 = vmatpush1.bf16.msra.mxu0 0
    %1395 = vmatprep.subr.bf16.mxu0 0
    %1396 = vmatpush1.bf16.msra.mxu0 0
    %1397 = vmatprep.subr.bf16.mxu0 0
    %1398 = vmatpush1.bf16.msra.mxu0 0
    %1399 = vmatprep.subr.bf16.mxu0 0
    %1400 = vmatpush1.bf16.msra.mxu0 0
    %1401 = vmatprep.subr.bf16.mxu0 0
    %1402 = vmatpush1.bf16.msra.mxu0 0
    %1403 = vmatprep.subr.bf16.mxu0 0
    %1404 = vmatpush1.bf16.msra.mxu0 0
    %1405 = vmatprep.subr.bf16.mxu0 0
    %1406 = vmatpush1.bf16.msra.mxu0 0
    %1407 = vmatprep.subr.bf16.mxu0 0
    %1408 = vmatpush1.bf16.msra.mxu0 0
    %1409 = vmatprep.mubr.bf16.mxu0 0
    %1410 = vmatmul.mubr.bf16.gmra.mrb[0].mxu0 %v1366
    %v1411 = vpop.f32.mrb[0].mxu0
    %v1412 = vadd.f32 0.0, %v1411
    %v1413 = vpop.f32.mrb[0].mxu0
    %v1414 = vpop.f32.mrb[0].mxu0
    %v1415 = vadd.f32 0.0, %v1414
    %v1416 = vpop.f32.mrb[0].mxu0
    %1417 = vmatprep.mubr.bf16.mxu0 0
    %1418 = vmatmul.mubr.bf16.gmra.mrb[0].mxu0 %v1369
    %v1419 = vpop.f32.mrb[0].mxu0
    %v1420 = vadd.f32 0.0, %v1419
    %v1421 = vpop.f32.mrb[0].mxu0
    %v1422 = vpop.f32.mrb[0].mxu0
    %v1423 = vadd.f32 0.0, %v1422
    %v1424 = vpop.f32.mrb[0].mxu0
    %1425 = vmatprep.mubr.bf16.mxu0 0
    %1426 = vmatmul.mubr.bf16.gmra.mrb[0].mxu0 %v1372
    %v1427 = vpop.f32.mrb[0].mxu0
    %v1428 = vadd.f32 0.0, %v1427
    %v1429 = vpop.f32.mrb[0].mxu0
    %v1430 = vpop.f32.mrb[0].mxu0
    %v1431 = vadd.f32 0.0, %v1430
    %v1432 = vpop.f32.mrb[0].mxu0
    %1433 = vdwg.mxu0
    %v1434 = vadd.f32 %v1355, %v1412
    %v1435 = vadd.f32 %v1356, %v1415
    %v1436 = vadd.f32 %v1357, %v1420
    %v1437 = vadd.f32 %v1358, %v1423
    %v1438 = vadd.f32 %v1359, %v1428
    %v1439 = vadd.f32 %v1360, %v1431
    %1440 = vst [vmem:[%s1032] sm:$0xff] %v1434
    %1441 = vst [vmem:[%s1032 + $0x8] sm:$0xff] %v1435
    %1442 = vst [vmem:[%s1032 + $0x10] sm:$0xff] %v1436
    %1443 = vst [vmem:[%s1032 + $0x18] sm:$0xff] %v1437
    %1444 = vst [vmem:[%s1032 + $0x20] sm:$0xff] %v1438
    %1445 = vst [vmem:[%s1032 + $0x28] sm:$0xff] %v1439
    %v1446 = vld [vmem:[%s1032] sm:$0xff]
    %v1447 = vld [vmem:[%s1032 + $0x8] sm:$0xff]
    %v1448 = vld [vmem:[%s1032 + $0x10] sm:$0xff]
    %v1449 = vld [vmem:[%s1032 + $0x18] sm:$0xff]
    %v1450 = vld [vmem:[%s1032 + $0x20] sm:$0xff]
    %v1451 = vld [vmem:[%s1032 + $0x28] sm:$0xff]
    %v1452 = vld [vmem:[%s540] sm:$0xf]
    %v1454 = vunpack.c.l.b16 %v946
    %v1455 = vpack.c.b16 %v1454, %v1454
    %v1456 = vshrl.u32 %v1362, 16
    %v1458 = vshll.u32 %v1362, 16
    %v1460 = vrot.slane %v1458, 1
    %v1461 = vor.u32 %v1456, %v1460
    %v1462 = vshll.u32 %v1363, 16
    %v1464 = vrot.slane %v1462, 1
    %v1465 = vsel %vm131, %v1461, %v1464
    %v1466 = vshrl.u32 %v1363, 16
    %v1468 = vor.u32 %v1466, %v1464
    %v1469 = vshll.u32 %v1364, 16
    %v1471 = vrot.slane %v1469, 1
    %v1472 = vsel %vm131, %v1468, %v1471
    %v1473 = vshrl.u32 %v1364, 16
    %v1475 = vor.u32 %v1473, %v1471
    %v1477 = vshll.u32 %v1455, 16
    %v1479 = vrot.slane %v1477, 1
    %v1480 = vsel %vm131, %v1475, %v1479
    %v1482 = vsel %vm40, %v1465, 0
    %v1485 = vsel %vm40, %v1472, 0
    %v1488 = vsel %vm40, %v1480, 0
    %v1491 = vand.u32 %v1452, %v53
    %1493 = vmatprep.subr.bf16.mxu0 0
    %1494 = vmatpush1.bf16.msra.mxu0 %v1491
    %1495 = vmatprep.subr.bf16.mxu0 0
    %1496 = vmatpush1.bf16.msra.mxu0 0
    %1497 = vmatprep.subr.bf16.mxu0 0
    %1498 = vmatpush1.bf16.msra.mxu0 0
    %1499 = vmatprep.subr.bf16.mxu0 0
    %1500 = vmatpush1.bf16.msra.mxu0 0
    %1501 = vmatprep.subr.bf16.mxu0 0
    %1502 = vmatpush1.bf16.msra.mxu0 0
    %1503 = vmatprep.subr.bf16.mxu0 0
    %1504 = vmatpush1.bf16.msra.mxu0 0
    %1505 = vmatprep.subr.bf16.mxu0 0
    %1506 = vmatpush1.bf16.msra.mxu0 0
    %1507 = vmatprep.subr.bf16.mxu0 0
    %1508 = vmatpush1.bf16.msra.mxu0 0
    %1509 = vmatprep.subr.bf16.mxu0 0
    %1510 = vmatpush1.bf16.msra.mxu0 0
    %1511 = vmatprep.subr.bf16.mxu0 0
    %1512 = vmatpush1.bf16.msra.mxu0 0
    %1513 = vmatprep.subr.bf16.mxu0 0
    %1514 = vmatpush1.bf16.msra.mxu0 0
    %1515 = vmatprep.subr.bf16.mxu0 0
    %1516 = vmatpush1.bf16.msra.mxu0 0
    %1517 = vmatprep.subr.bf16.mxu0 0
    %1518 = vmatpush1.bf16.msra.mxu0 0
    %1519 = vmatprep.subr.bf16.mxu0 0
    %1520 = vmatpush1.bf16.msra.mxu0 0
    %1521 = vmatprep.subr.bf16.mxu0 0
    %1522 = vmatpush1.bf16.msra.mxu0 0
    %1523 = vmatprep.subr.bf16.mxu0 0
    %1524 = vmatpush1.bf16.msra.mxu0 0
    %1525 = vmatprep.mubr.bf16.mxu0 0
    %1526 = vmatmul.mubr.bf16.gmra.mrb[0].mxu0 %v1482
    %v1527 = vpop.f32.mrb[0].mxu0
    %v1528 = vadd.f32 0.0, %v1527
    %v1529 = vpop.f32.mrb[0].mxu0
    %v1530 = vpop.f32.mrb[0].mxu0
    %v1531 = vadd.f32 0.0, %v1530
    %v1532 = vpop.f32.mrb[0].mxu0
    %1533 = vmatprep.mubr.bf16.mxu0 0
    %1534 = vmatmul.mubr.bf16.gmra.mrb[0].mxu0 %v1485
    %v1535 = vpop.f32.mrb[0].mxu0
    %v1536 = vadd.f32 0.0, %v1535
    %v1537 = vpop.f32.mrb[0].mxu0
    %v1538 = vpop.f32.mrb[0].mxu0
    %v1539 = vadd.f32 0.0, %v1538
    %v1540 = vpop.f32.mrb[0].mxu0
    %1541 = vmatprep.mubr.bf16.mxu0 0
    %1542 = vmatmul.mubr.bf16.gmra.mrb[0].mxu0 %v1488
    %v1543 = vpop.f32.mrb[0].mxu0
    %v1544 = vadd.f32 0.0, %v1543
    %v1545 = vpop.f32.mrb[0].mxu0
    %v1546 = vpop.f32.mrb[0].mxu0
    %v1547 = vadd.f32 0.0, %v1546
    %v1548 = vpop.f32.mrb[0].mxu0
    %1549 = vdwg.mxu0
    %v1550 = vadd.f32 %v1446, %v1528
    %v1551 = vadd.f32 %v1447, %v1531
    %v1552 = vadd.f32 %v1448, %v1536
    %v1553 = vadd.f32 %v1449, %v1539
    %v1554 = vadd.f32 %v1450, %v1544
    %v1555 = vadd.f32 %v1451, %v1547
    %1556 = vst [vmem:[%s1032] sm:$0xff] %v1550
    %1557 = vst [vmem:[%s1032 + $0x8] sm:$0xff] %v1551
    %1558 = vst [vmem:[%s1032 + $0x10] sm:$0xff] %v1552
    %1559 = vst [vmem:[%s1032 + $0x18] sm:$0xff] %v1553
    %1560 = vst [vmem:[%s1032 + $0x20] sm:$0xff] %v1554
    %1561 = vst [vmem:[%s1032 + $0x28] sm:$0xff] %v1555
    %v1562 = vld [vmem:[%s1032] sm:$0xff]
    %v1563 = vld [vmem:[%s1032 + $0x8] sm:$0xff]
    %v1564 = vld [vmem:[%s1032 + $0x10] sm:$0xff]
    %v1565 = vld [vmem:[%s1032 + $0x18] sm:$0xff]
    %v1566 = vld [vmem:[%s1032 + $0x20] sm:$0xff]
    %v1567 = vld [vmem:[%s1032 + $0x28] sm:$0xff]
    %v1568 = vld [vmem:[%s657] sm:$0xf]
    %v1569 = vrot.slane %v1362, 3
    %v1570 = vrot.slane %v1363, 3
    %v1571 = vsel %vm659, %v1569, %v1570
    %v1572 = vrot.slane %v1364, 3
    %v1573 = vsel %vm659, %v1570, %v1572
    %v1574 = vrot.slane %v1455, 3
    %v1575 = vsel %vm659, %v1572, %v1574
    %v1577 = vsel %vm40, %v1571, 0
    %v1580 = vsel %vm40, %v1573, 0
    %v1583 = vsel %vm40, %v1575, 0
    %v1586 = vand.u32 %v1568, %v53
    %1588 = vmatprep.subr.bf16.mxu0 0
    %1589 = vmatpush1.bf16.msra.mxu0 %v1586
    %1590 = vmatprep.subr.bf16.mxu0 0
    %1591 = vmatpush1.bf16.msra.mxu0 0
    %1592 = vmatprep.subr.bf16.mxu0 0
    %1593 = vmatpush1.bf16.msra.mxu0 0
    %1594 = vmatprep.subr.bf16.mxu0 0
    %1595 = vmatpush1.bf16.msra.mxu0 0
    %1596 = vmatprep.subr.bf16.mxu0 0
    %1597 = vmatpush1.bf16.msra.mxu0 0
    %1598 = vmatprep.subr.bf16.mxu0 0
    %1599 = vmatpush1.bf16.msra.mxu0 0
    %1600 = vmatprep.subr.bf16.mxu0 0
    %1601 = vmatpush1.bf16.msra.mxu0 0
    %1602 = vmatprep.subr.bf16.mxu0 0
    %1603 = vmatpush1.bf16.msra.mxu0 0
    %1604 = vmatprep.subr.bf16.mxu0 0
    %1605 = vmatpush1.bf16.msra.mxu0 0
    %1606 = vmatprep.subr.bf16.mxu0 0
    %1607 = vmatpush1.bf16.msra.mxu0 0
    %1608 = vmatprep.subr.bf16.mxu0 0
    %1609 = vmatpush1.bf16.msra.mxu0 0
    %1610 = vmatprep.subr.bf16.mxu0 0
    %1611 = vmatpush1.bf16.msra.mxu0 0
    %1612 = vmatprep.subr.bf16.mxu0 0
    %1613 = vmatpush1.bf16.msra.mxu0 0
    %1614 = vmatprep.subr.bf16.mxu0 0
    %1615 = vmatpush1.bf16.msra.mxu0 0
    %1616 = vmatprep.subr.bf16.mxu0 0
    %1617 = vmatpush1.bf16.msra.mxu0 0
    %1618 = vmatprep.subr.bf16.mxu0 0
    %1619 = vmatpush1.bf16.msra.mxu0 0
    %1620 = vmatprep.mubr.bf16.mxu0 0
    %1621 = vmatmul.mubr.bf16.gmra.mrb[0].mxu0 %v1577
    %v1622 = vpop.f32.mrb[0].mxu0
    %v1623 = vadd.f32 0.0, %v1622
    %v1624 = vpop.f32.mrb[0].mxu0
    %v1625 = vpop.f32.mrb[0].mxu0
    %v1626 = vadd.f32 0.0, %v1625
    %v1627 = vpop.f32.mrb[0].mxu0
    %1628 = vmatprep.mubr.bf16.mxu0 0
    %1629 = vmatmul.mubr.bf16.gmra.mrb[0].mxu0 %v1580
    %v1630 = vpop.f32.mrb[0].mxu0
    %v1631 = vadd.f32 0.0, %v1630
    %v1632 = vpop.f32.mrb[0].mxu0
    %v1633 = vpop.f32.mrb[0].mxu0
    %v1634 = vadd.f32 0.0, %v1633
    %v1635 = vpop.f32.mrb[0].mxu0
    %1636 = vmatprep.mubr.bf16.mxu0 0
    %1637 = vmatmul.mubr.bf16.gmra.mrb[0].mxu0 %v1583
    %v1638 = vpop.f32.mrb[0].mxu0
    %v1639 = vadd.f32 0.0, %v1638
    %v1640 = vpop.f32.mrb[0].mxu0
    %v1641 = vpop.f32.mrb[0].mxu0
    %v1642 = vadd.f32 0.0, %v1641
    %v1643 = vpop.f32.mrb[0].mxu0
    %1644 = vdwg.mxu0
    %v1645 = vadd.f32 %v1562, %v1623
    %v1646 = vadd.f32 %v1563, %v1626
    %v1647 = vadd.f32 %v1564, %v1631
    %v1648 = vadd.f32 %v1565, %v1634
    %v1649 = vadd.f32 %v1566, %v1639
    %v1650 = vadd.f32 %v1567, %v1642
    %1651 = vst [vmem:[%s1032] sm:$0xff] %v1645
    %1652 = vst [vmem:[%s1032 + $0x8] sm:$0xff] %v1646
    %1653 = vst [vmem:[%s1032 + $0x10] sm:$0xff] %v1647
    %1654 = vst [vmem:[%s1032 + $0x18] sm:$0xff] %v1648
    %1655 = vst [vmem:[%s1032 + $0x20] sm:$0xff] %v1649
    %1656 = vst [vmem:[%s1032 + $0x28] sm:$0xff] %v1650
    %v1657 = vld [vmem:[%s1032] sm:$0xff]
    %v1658 = vld [vmem:[%s1032 + $0x8] sm:$0xff]
    %v1659 = vld [vmem:[%s1032 + $0x10] sm:$0xff]
    %v1660 = vld [vmem:[%s1032 + $0x18] sm:$0xff]
    %v1661 = vld [vmem:[%s1032 + $0x20] sm:$0xff]
    %v1662 = vld [vmem:[%s1032 + $0x28] sm:$0xff]
    %v1663 = vld [vmem:[%s754] sm:$0xf]
    %v1664 = vrot.slane %v1456, 3
    %v1665 = vrot.slane %v1458, 4
    %v1666 = vor.u32 %v1664, %v1665
    %v1667 = vrot.slane %v1466, 3
    %v1668 = vrot.slane %v1462, 4
    %v1669 = vor.u32 %v1667, %v1668
    %v1670 = vsel %vm343, %v1666, %v1669
    %v1671 = vrot.slane %v1473, 3
    %v1672 = vrot.slane %v1469, 4
    %v1673 = vor.u32 %v1671, %v1672
    %v1674 = vsel %vm343, %v1669, %v1673
    %v1675 = vshrl.u32 %v1455, 16
    %v1677 = vrot.slane %v1675, 3
    %v1678 = vrot.slane %v1477, 4
    %v1679 = vor.u32 %v1677, %v1678
    %v1680 = vsel %vm343, %v1673, %v1679
    %v1682 = vsel %vm40, %v1670, 0
    %v1685 = vsel %vm40, %v1674, 0
    %v1688 = vsel %vm40, %v1680, 0
    %v1691 = vand.u32 %v1663, %v53
    %1693 = vmatprep.subr.bf16.mxu0 0
    %1694 = vmatpush1.bf16.msra.mxu0 %v1691
    %1695 = vmatprep.subr.bf16.mxu0 0
    %1696 = vmatpush1.bf16.msra.mxu0 0
    %1697 = vmatprep.subr.bf16.mxu0 0
    %1698 = vmatpush1.bf16.msra.mxu0 0
    %1699 = vmatprep.subr.bf16.mxu0 0
    %1700 = vmatpush1.bf16.msra.mxu0 0
    %1701 = vmatprep.subr.bf16.mxu0 0
    %1702 = vmatpush1.bf16.msra.mxu0 0
    %1703 = vmatprep.subr.bf16.mxu0 0
    %1704 = vmatpush1.bf16.msra.mxu0 0
    %1705 = vmatprep.subr.bf16.mxu0 0
    %1706 = vmatpush1.bf16.msra.mxu0 0
    %1707 = vmatprep.subr.bf16.mxu0 0
    %1708 = vmatpush1.bf16.msra.mxu0 0
    %1709 = vmatprep.subr.bf16.mxu0 0
    %1710 = vmatpush1.bf16.msra.mxu0 0
    %1711 = vmatprep.subr.bf16.mxu0 0
    %1712 = vmatpush1.bf16.msra.mxu0 0
    %1713 = vmatprep.subr.bf16.mxu0 0
    %1714 = vmatpush1.bf16.msra.mxu0 0
    %1715 = vmatprep.subr.bf16.mxu0 0
    %1716 = vmatpush1.bf16.msra.mxu0 0
    %1717 = vmatprep.subr.bf16.mxu0 0
    %1718 = vmatpush1.bf16.msra.mxu0 0
    %1719 = vmatprep.subr.bf16.mxu0 0
    %1720 = vmatpush1.bf16.msra.mxu0 0
    %1721 = vmatprep.subr.bf16.mxu0 0
    %1722 = vmatpush1.bf16.msra.mxu0 0
    %1723 = vmatprep.subr.bf16.mxu0 0
    %1724 = vmatpush1.bf16.msra.mxu0 0
    %1725 = vmatprep.mubr.bf16.mxu0 0
    %1726 = vmatmul.mubr.bf16.gmra.mrb[0].mxu0 %v1682
    %v1727 = vpop.f32.mrb[0].mxu0
    %v1728 = vadd.f32 0.0, %v1727
    %v1729 = vpop.f32.mrb[0].mxu0
    %v1730 = vpop.f32.mrb[0].mxu0
    %v1731 = vadd.f32 0.0, %v1730
    %v1732 = vpop.f32.mrb[0].mxu0
    %1733 = vmatprep.mubr.bf16.mxu0 0
    %1734 = vmatmul.mubr.bf16.gmra.mrb[0].mxu0 %v1685
    %v1735 = vpop.f32.mrb[0].mxu0
    %v1736 = vadd.f32 0.0, %v1735
    %v1737 = vpop.f32.mrb[0].mxu0
    %v1738 = vpop.f32.mrb[0].mxu0
    %v1739 = vadd.f32 0.0, %v1738
    %v1740 = vpop.f32.mrb[0].mxu0
    %1741 = vmatprep.mubr.bf16.mxu0 0
    %1742 = vmatmul.mubr.bf16.gmra.mrb[0].mxu0 %v1688
    %v1743 = vpop.f32.mrb[0].mxu0
    %v1744 = vadd.f32 0.0, %v1743
    %v1745 = vpop.f32.mrb[0].mxu0
    %v1746 = vpop.f32.mrb[0].mxu0
    %v1747 = vadd.f32 0.0, %v1746
    %v1748 = vpop.f32.mrb[0].mxu0
    %1749 = vdwg.mxu0
    %v1750 = vadd.f32 %v1657, %v1728
    %v1751 = vadd.f32 %v1658, %v1731
    %v1752 = vadd.f32 %v1659, %v1736
    %v1753 = vadd.f32 %v1660, %v1739
    %v1754 = vadd.f32 %v1661, %v1744
    %v1755 = vadd.f32 %v1662, %v1747
    %1756 = vst [vmem:[%s1032] sm:$0xff] %v1750
    %1757 = vst [vmem:[%s1032 + $0x8] sm:$0xff] %v1751
    %1758 = vst [vmem:[%s1032 + $0x10] sm:$0xff] %v1752
    %1759 = vst [vmem:[%s1032 + $0x18] sm:$0xff] %v1753
    %1760 = vst [vmem:[%s1032 + $0x20] sm:$0xff] %v1754
    %1761 = vst [vmem:[%s1032 + $0x28] sm:$0xff] %v1755
    %v1762 = vld [vmem:[%s1032] sm:$0xff]
    %v1763 = vld [vmem:[%s1032 + $0x8] sm:$0xff]
    %v1764 = vld [vmem:[%s1032 + $0x10] sm:$0xff]
    %v1765 = vld [vmem:[%s1032 + $0x18] sm:$0xff]
    %v1766 = vld [vmem:[%s1032 + $0x20] sm:$0xff]
    %v1767 = vld [vmem:[%s1032 + $0x28] sm:$0xff]
    %v1768 = vld [vmem:[%s860] sm:$0xf]
    %v1769 = vpack.c.b16 %v1454, %v1047
    %v1771 = vsel %vm40, %v1769, 0
    %v1774 = vand.u32 %v1768, %v53
    %1776 = vmatprep.subr.bf16.mxu0 0
    %1777 = vmatpush1.bf16.msra.mxu0 %v1774
    %1778 = vmatprep.subr.bf16.mxu0 0
    %1779 = vmatpush1.bf16.msra.mxu0 0
    %1780 = vmatprep.subr.bf16.mxu0 0
    %1781 = vmatpush1.bf16.msra.mxu0 0
    %1782 = vmatprep.subr.bf16.mxu0 0
    %1783 = vmatpush1.bf16.msra.mxu0 0
    %1784 = vmatprep.subr.bf16.mxu0 0
    %1785 = vmatpush1.bf16.msra.mxu0 0
    %1786 = vmatprep.subr.bf16.mxu0 0
    %1787 = vmatpush1.bf16.msra.mxu0 0
    %1788 = vmatprep.subr.bf16.mxu0 0
    %1789 = vmatpush1.bf16.msra.mxu0 0
    %1790 = vmatprep.subr.bf16.mxu0 0
    %1791 = vmatpush1.bf16.msra.mxu0 0
    %1792 = vmatprep.subr.bf16.mxu0 0
    %1793 = vmatpush1.bf16.msra.mxu0 0
    %1794 = vmatprep.subr.bf16.mxu0 0
    %1795 = vmatpush1.bf16.msra.mxu0 0
    %1796 = vmatprep.subr.bf16.mxu0 0
    %1797 = vmatpush1.bf16.msra.mxu0 0
    %1798 = vmatprep.subr.bf16.mxu0 0
    %1799 = vmatpush1.bf16.msra.mxu0 0
    %1800 = vmatprep.subr.bf16.mxu0 0
    %1801 = vmatpush1.bf16.msra.mxu0 0
    %1802 = vmatprep.subr.bf16.mxu0 0
    %1803 = vmatpush1.bf16.msra.mxu0 0
    %1804 = vmatprep.subr.bf16.mxu0 0
    %1805 = vmatpush1.bf16.msra.mxu0 0
    %1806 = vmatprep.subr.bf16.mxu0 0
    %1807 = vmatpush1.bf16.msra.mxu0 0
    %1808 = vmatprep.mubr.bf16.mxu0 0
    %1809 = vmatmul.mubr.bf16.gmra.mrb[0].mxu0 %v967
    %v1810 = vpop.f32.mrb[0].mxu0
    %v1811 = vadd.f32 0.0, %v1810
    %v1812 = vpop.f32.mrb[0].mxu0
    %v1813 = vpop.f32.mrb[0].mxu0
    %v1814 = vadd.f32 0.0, %v1813
    %v1815 = vpop.f32.mrb[0].mxu0
    %1816 = vmatprep.mubr.bf16.mxu0 0
    %1817 = vmatmul.mubr.bf16.gmra.mrb[0].mxu0 %v970
    %v1818 = vpop.f32.mrb[0].mxu0
    %v1819 = vadd.f32 0.0, %v1818
    %v1820 = vpop.f32.mrb[0].mxu0
    %v1821 = vpop.f32.mrb[0].mxu0
    %v1822 = vadd.f32 0.0, %v1821
    %v1823 = vpop.f32.mrb[0].mxu0
    %1824 = vmatprep.mubr.bf16.mxu0 0
    %1825 = vmatmul.mubr.bf16.gmra.mrb[0].mxu0 %v1771
    %v1826 = vpop.f32.mrb[0].mxu0
    %v1827 = vadd.f32 0.0, %v1826
    %v1828 = vpop.f32.mrb[0].mxu0
    %v1829 = vpop.f32.mrb[0].mxu0
    %v1830 = vadd.f32 0.0, %v1829
    %v1831 = vpop.f32.mrb[0].mxu0
    %1832 = vdwg.mxu0
    %v1833 = vadd.f32 %v1762, %v1811
    %v1834 = vadd.f32 %v1763, %v1814
    %v1835 = vadd.f32 %v1764, %v1819
    %v1836 = vadd.f32 %v1765, %v1822
    %v1837 = vadd.f32 %v1766, %v1827
    %v1838 = vadd.f32 %v1767, %v1830
    %1839 = vst [vmem:[%s1032] sm:$0xff] %v1833
    %1840 = vst [vmem:[%s1032 + $0x8] sm:$0xff] %v1834
    %1841 = vst [vmem:[%s1032 + $0x10] sm:$0xff] %v1835
    %1842 = vst [vmem:[%s1032 + $0x18] sm:$0xff] %v1836
    %1843 = vst [vmem:[%s1032 + $0x20] sm:$0xff] %v1837
    %1844 = vst [vmem:[%s1032 + $0x28] sm:$0xff] %v1838
    %v1845 = vld [vmem:[%s2] sm:$0xff]
    %v1846 = vld [vmem:[%s2 + $0x8] sm:$0xff]
    %v1847 = vld [vmem:[%s2 + $0x10] sm:$0xff]
    %v1848 = vld [vmem:[%s2 + $0x18] sm:$0xff]
    %v1849 = vld [vmem:[%s2 + $0x20] sm:$0xff]
    %v1850 = vld [vmem:[%s2 + $0x28] sm:$0xff]
    %v1851 = vld [vmem:[#allocation2] sm:$0xff]
    %v1852 = vld [vmem:[#allocation2 + $0x8] sm:$0xff]
    %v1853 = vld [vmem:[#allocation2 + $0x10] sm:$0xff]
    %v1854 = vld [vmem:[#allocation2 + $0x18] sm:$0xff]
    %v1855 = vld [vmem:[#allocation2 + $0x20] sm:$0xff]
    %v1856 = vld [vmem:[#allocation2 + $0x28] sm:$0xff]
    %1858 = vset.pattern.permute.xlu0 0
    %1859 = vperm.xlu0 %1858, %v1845
    %v1860 = vpop.permute.xlu0 %1859
    %1863 = vset.pattern.permute.xlu0 0
    %1864 = vperm.xlu0 %1863, %v1846
    %v1865 = vpop.permute.xlu0 %1864
    %1868 = vset.pattern.permute.xlu0 0
    %1869 = vperm.xlu0 %1868, %v1847
    %v1870 = vpop.permute.xlu0 %1869
    %1873 = vset.pattern.permute.xlu0 0
    %1874 = vperm.xlu0 %1873, %v1848
    %v1875 = vpop.permute.xlu0 %1874
    %1878 = vset.pattern.permute.xlu0 0
    %1879 = vperm.xlu0 %1878, %v1849
    %v1880 = vpop.permute.xlu0 %1879
    %1883 = vset.pattern.permute.xlu0 0
    %1884 = vperm.xlu0 %1883, %v1850
    %v1885 = vpop.permute.xlu0 %1884
    %v1887 = vmul.f32 %v1851, %v1860
    %v1888 = vmul.f32 %v1852, %v1865
    %v1889 = vmul.f32 %v1853, %v1870
    %v1890 = vmul.f32 %v1854, %v1875
    %v1891 = vmul.f32 %v1855, %v1880
    %v1892 = vmul.f32 %v1856, %v1885
    %v1893 = vadd.f32 %v1887, %v1888
    %v1894 = vadd.f32 %v1893, %v1889
    %v1895 = vadd.f32 %v1894, %v1890
    %v1896 = vadd.f32 %v1895, %v1891
    %v1897 = vadd.f32 %v1896, %v1892
    %v1898 = vrot.slane %v1897, 4
    %v1899 = vadd.f32 %v1897, %v1898
    %v1900 = vrot.slane %v1899, 2
    %v1901 = vadd.f32 %v1899, %v1900
    %v1902 = vrot.slane %v1901, 1
    %v1903 = vadd.f32 %v1901, %v1902
    %v1904 = vadd.f32 %v1903, 0.0
    %v1905 = vmul.f32 %v1887, %v1887
    %v1906 = vmul.f32 %v1888, %v1888
    %v1907 = vmul.f32 %v1889, %v1889
    %v1908 = vmul.f32 %v1890, %v1890
    %v1909 = vmul.f32 %v1891, %v1891
    %v1910 = vmul.f32 %v1892, %v1892
    %v1911 = vadd.f32 %v1905, %v1906
    %v1912 = vadd.f32 %v1911, %v1907
    %v1913 = vadd.f32 %v1912, %v1908
    %v1914 = vadd.f32 %v1913, %v1909
    %v1915 = vadd.f32 %v1914, %v1910
    %v1916 = vrot.slane %v1915, 4
    %v1917 = vadd.f32 %v1915, %v1916
    %v1918 = vrot.slane %v1917, 2
    %v1919 = vadd.f32 %v1917, %v1918
    %v1920 = vrot.slane %v1919, 1
    %v1921 = vadd.f32 %v1919, %v1920
    %v1922 = vadd.f32 %v1921, 0.0
    %v1923 = vld [vmem:[%s1032] sm:$0xff]
    %v1924 = vld [vmem:[%s1032 + $0x8] sm:$0xff]
    %v1925 = vld [vmem:[%s1032 + $0x10] sm:$0xff]
    %v1926 = vld [vmem:[%s1032 + $0x18] sm:$0xff]
    %v1927 = vld [vmem:[%s1032 + $0x20] sm:$0xff]
    %v1928 = vld [vmem:[%s1032 + $0x28] sm:$0xff]
    %v1929 = vmul.f32 %v1923, %v1860
    %v1930 = vmul.f32 %v1924, %v1865
    %v1931 = vmul.f32 %v1925, %v1870
    %v1932 = vmul.f32 %v1926, %v1875
    %v1933 = vmul.f32 %v1927, %v1880
    %v1934 = vmul.f32 %v1928, %v1885
    %v1935 = vadd.f32 %v1929, %v1930
    %v1936 = vadd.f32 %v1935, %v1931
    %v1937 = vadd.f32 %v1936, %v1932
    %v1938 = vadd.f32 %v1937, %v1933
    %v1939 = vadd.f32 %v1938, %v1934
    %v1940 = vrot.slane %v1939, 4
    %v1941 = vadd.f32 %v1939, %v1940
    %v1942 = vrot.slane %v1941, 2
    %v1943 = vadd.f32 %v1941, %v1942
    %v1944 = vrot.slane %v1943, 1
    %v1945 = vadd.f32 %v1943, %v1944
    %v1946 = vadd.f32 %v1904, %v1945
    %v1947 = vmul.f32 %v1929, %v1929
    %v1948 = vmul.f32 %v1930, %v1930
    %v1949 = vmul.f32 %v1931, %v1931
    %v1950 = vmul.f32 %v1932, %v1932
    %v1951 = vmul.f32 %v1933, %v1933
    %v1952 = vmul.f32 %v1934, %v1934
    %v1953 = vadd.f32 %v1947, %v1948
    %v1954 = vadd.f32 %v1953, %v1949
    %v1955 = vadd.f32 %v1954, %v1950
    %v1956 = vadd.f32 %v1955, %v1951
    %v1957 = vadd.f32 %v1956, %v1952
    %v1958 = vrot.slane %v1957, 4
    %v1959 = vadd.f32 %v1957, %v1958
    %v1960 = vrot.slane %v1959, 2
    %v1961 = vadd.f32 %v1959, %v1960
    %v1962 = vrot.slane %v1961, 1
    %v1963 = vadd.f32 %v1961, %v1962
    %v1964 = vadd.f32 %v1922, %v1963
    %v1965 = vmul.f32 %v1946, 0.016666668
    %v1966 = vmul.f32 %v1964, 0.016666668
    %v1967 = vmul.f32 %v1965, %v1965
    %v1968 = vsub.f32 %v1966, %v1967
    %v1969 = vmax.f32 %v1968, 0.0
    %v1970 = vadd.f32 %v1969, 1e-05
    %v1971 = vrsqrt.pop %v1970
    %v1972 = vsub.f32 %v1851, %v1965
    %v1973 = vsub.f32 %v1852, %v1965
    %v1974 = vsub.f32 %v1853, %v1965
    %v1975 = vsub.f32 %v1854, %v1965
    %v1976 = vsub.f32 %v1855, %v1965
    %v1977 = vsub.f32 %v1856, %v1965
    %v1978 = vmul.f32 %v1972, %v1971
    %v1979 = vmul.f32 %v1973, %v1971
    %v1980 = vmul.f32 %v1974, %v1971
    %v1981 = vmul.f32 %v1975, %v1971
    %v1982 = vmul.f32 %v1976, %v1971
    %v1983 = vmul.f32 %v1977, %v1971
    %v1984 = vmax.f32 %v1978, 0.0
    %v1985 = vmax.f32 %v1979, 0.0
    %v1986 = vmax.f32 %v1980, 0.0
    %v1987 = vmax.f32 %v1981, 0.0
    %v1988 = vmax.f32 %v1982, 0.0
    %v1989 = vmax.f32 %v1983, 0.0
    %v1990 = vpack.c.bf16 %v1985, %v1984
    %v1991 = vpack.c.bf16 %v1987, %v1986
    %v1992 = vpack.c.bf16 %v1989, %v1988
    %v1996 = vunpack.c.l.b16 %v1990
    %v1997 = vunpack.c.h.b16 %v1990
    %v1998 = vunpack.c.l.b16 %v1991
    %v1999 = vunpack.c.h.b16 %v1991
    %v2000 = vunpack.c.l.b16 %v1992
    %v2001 = vunpack.c.h.b16 %v1992
    %v2002 = vpack.c.b16 %v1996, %v1996
    %v2003 = vpack.c.b16 %v1997, %v1997
    %v2004 = vpack.c.b16 %v1998, %v1998
    %v2005 = vpack.c.b16 %v1999, %v1999
    %v2006 = vpack.c.b16 %v2000, %v2000
    %v2007 = vpack.c.b16 %v2001, %v2001
    %2014 = vst [vmem:[#allocation3] sm:$0xf] %v2002
    %2015 = vst [vmem:[#allocation3 + $0x4] sm:$0xf] %v2003
    %2016 = vst [vmem:[#allocation3 + $0x8] sm:$0xf] %v2004
    %2017 = vst [vmem:[#allocation3 + $0xc] sm:$0xf] %v2005
    %2018 = vst [vmem:[#allocation3 + $0x10] sm:$0xf] %v2006
    %2019 = vst [vmem:[#allocation3 + $0x14] sm:$0xf] %v2007
    %v2020 = vld [vmem:[%s1032] sm:$0xff]
    %v2021 = vld [vmem:[%s1032 + $0x8] sm:$0xff]
    %v2022 = vld [vmem:[%s1032 + $0x10] sm:$0xff]
    %v2023 = vld [vmem:[%s1032 + $0x18] sm:$0xff]
    %v2024 = vld [vmem:[%s1032 + $0x20] sm:$0xff]
    %v2025 = vld [vmem:[%s1032 + $0x28] sm:$0xff]
    %v2026 = vsub.f32 %v2020, %v1965
    %v2027 = vsub.f32 %v2021, %v1965
    %v2028 = vsub.f32 %v2022, %v1965
    %v2029 = vsub.f32 %v2023, %v1965
    %v2030 = vsub.f32 %v2024, %v1965
    %v2031 = vsub.f32 %v2025, %v1965
    %v2032 = vmul.f32 %v2026, %v1971
    %v2033 = vmul.f32 %v2027, %v1971
    %v2034 = vmul.f32 %v2028, %v1971
    %v2035 = vmul.f32 %v2029, %v1971
    %v2036 = vmul.f32 %v2030, %v1971
    %v2037 = vmul.f32 %v2031, %v1971
    %v2038 = vmax.f32 %v2032, 0.0
    %v2039 = vmax.f32 %v2033, 0.0
    %v2040 = vmax.f32 %v2034, 0.0
    %v2041 = vmax.f32 %v2035, 0.0
    %v2042 = vmax.f32 %v2036, 0.0
    %v2043 = vmax.f32 %v2037, 0.0
    %v2044 = vpack.c.bf16 %v2039, %v2038
    %v2045 = vpack.c.bf16 %v2041, %v2040
    %v2046 = vpack.c.bf16 %v2043, %v2042
    %v2050 = vunpack.c.l.b16 %v2044
    %v2051 = vunpack.c.h.b16 %v2044
    %v2052 = vunpack.c.l.b16 %v2045
    %v2053 = vunpack.c.h.b16 %v2045
    %v2054 = vunpack.c.l.b16 %v2046
    %v2055 = vunpack.c.h.b16 %v2046
    %v2056 = vpack.c.b16 %v2050, %v2050
    %v2057 = vpack.c.b16 %v2051, %v2051
    %v2058 = vpack.c.b16 %v2052, %v2052
    %v2059 = vpack.c.b16 %v2053, %v2053
    %v2060 = vpack.c.b16 %v2054, %v2054
    %v2061 = vpack.c.b16 %v2055, %v2055
    %s2068 = scalar_lea.vmem [#allocation3], 24
    %2069 = vst [vmem:[%s2068] sm:$0xf] %v2056
    %2070 = vst [vmem:[%s2068 + $0x4] sm:$0xf] %v2057
    %2071 = vst [vmem:[%s2068 + $0x8] sm:$0xf] %v2058
    %2072 = vst [vmem:[%s2068 + $0xc] sm:$0xf] %v2059
    %2073 = vst [vmem:[%s2068 + $0x10] sm:$0xf] %v2060
    %2074 = vst [vmem:[%s2068 + $0x14] sm:$0xf] %v2061
    // Predicated region
    $region14: #{tpu_custom_call.1} parent=1 // pred_check
      _
    $region15: #{tpu_custom_call.1} parent=1 // pred_check_branch
      %2076 = sbr.rel (0) target = $region17
    $region16: #{tpu_custom_call.1} parent=1 // pred_region
      %s2078 = ssub.s32 768, 768
      %2079 = vsyncadd [#allocation4], %s2078
      %s2080 = sshll.u32 [#allocation3], 4
      %s2081 = int_to_ptr.vmem [resolvable:$true] %s2080
      %2086 = dma.vmem_to_hbm [thread:$0]  %s2081, 768, %s3, [#allocation4], 64, 64, 4
    $region17: #{tpu_custom_call.1} parent=1 // pred_fallthru
      _
    // Predicated region
    $region18: #{tpu_custom_call.1} parent=1 // pred_check
      _
    $region19: #{tpu_custom_call.1} parent=1 // pred_check_branch
      %2088 = sbr.rel (0) target = $region21
    $region20: #{tpu_custom_call.1} parent=1 // pred_region
      %2089 = dma.done [#allocation4], 768
    $region21: #{tpu_custom_call.1} parent=1 // pred_fallthru
      _
    %2090 = vsyncpa [#allocation4], 1

</llo_original>
